<compile_context>
chip_gen: v5e
topology: v5e:2x2
jax: 0.10.0
libtpu: 0.0.40
codegen_flags: <defaults>
</compile_context>

<pallas_src>
import jax
import jax.numpy as jnp
from jax.experimental import pallas as pl
from jax.experimental.pallas import tpu as pltpu

K = 7      # conv kernel size (conv3x1 actually uses kernel_size=7)
PAD = 3    # padding=3 -> 'same' length for stride=1
HALO = 8   # sublane-aligned halo (>= PAD) so interior scratch stores are aligned


def basic_block_kernel(x_ref, w1_ref, w2_ref, bn1s_ref, bn1b_ref,
                       bn2s_ref, bn2b_ref, wfc1_ref, wfc2_ref,
                       o_ref, xbuf, hbuf):
    # x_ref : (Bt, L, Cp) f32   channels-last, channel-padded input block
    # w1_ref: (K*Cp, Cp) bf16   im2col-repacked conv1 weights
    # w2_ref: (K*Cp, Cp) bf16   im2col-repacked conv2 weights
    # bn*_ref: (1, Cp) f32      folded BN scale / bias
    # wfc*_ref: (Cp, Cred) / (Cred, Cp) f32   SE FC weights
    # o_ref : (Bt, L, Cp) f32
    # xbuf/hbuf: VMEM scratch (Bt, L + 2*HALO, Cp) f32 with zero halos
    Bt, L, Cp = x_ref.shape
    k0 = HALO - PAD

    # Zero only the halo rows (the interior is fully overwritten below).
    # Done every step so it is correct even when the batch grid axis is
    # sharded across TensorCores.
    zhalo = jnp.zeros((Bt, HALO, Cp), xbuf.dtype)
    xbuf[:, :HALO, :] = zhalo
    xbuf[:, HALO + L:, :] = zhalo
    hbuf[:, :HALO, :] = zhalo
    hbuf[:, HALO + L:, :] = zhalo

    x = x_ref[...]                                    # (Bt, L, Cp) f32
    xbuf[:, HALO:HALO + L, :] = x

    def conv(buf, w_ref):
        # im2col: concat the K shifted views along lanes -> one MXU matmul.
        cols = jnp.concatenate(
            [buf[:, k0 + k:k0 + k + L, :] for k in range(K)], axis=-1)
        cols = cols.reshape(Bt * L, K * Cp).astype(jnp.bfloat16)
        return jnp.dot(cols, w_ref[...], preferred_element_type=jnp.float32)

    # ---- conv1 -> bn1 -> relu  (Dropout(0.2) is identity in eval mode) ----
    # TODO(synk): train-mode Dropout (RNG mask) not implemented.
    h = conv(xbuf, w1_ref)                            # (Bt*L, Cp) f32
    h = jnp.maximum(h * bn1s_ref[...] + bn1b_ref[...], 0.0)

    # ---- conv2 -> bn2 ----
    hbuf[:, HALO:HALO + L, :] = h.reshape(Bt, L, Cp)
    h2 = conv(hbuf, w2_ref)
    h2 = h2 * bn2s_ref[...] + bn2b_ref[...]
    h2 = h2.reshape(Bt, L, Cp)

    # ---- SE: global average pool over length, 2 FCs, sigmoid gate ----
    # (batched over the folded batch rows instead of M=1 dots)
    y = jnp.mean(h2, axis=1)                          # (Bt, Cp)
    y = jnp.maximum(
        jnp.dot(y, wfc1_ref[...], preferred_element_type=jnp.float32), 0.0)
    y = jax.nn.sigmoid(
        jnp.dot(y, wfc2_ref[...], preferred_element_type=jnp.float32))
    h2 = h2 * y[:, None, :]

    # ---- residual add + relu (downsample is None: inplanes == planes) ----
    o_ref[...] = jnp.maximum(h2 + x, 0.0).astype(o_ref.dtype)


def basic_block_pallas(x_ncl, kernel_params, *, block_b=None):
    """x_ncl: (B, C, L) like PyTorch Conv1d. Returns (B, C, L)."""
    w1r, w2r, bn1s, bn1b, bn2s, bn2b, wfc1, wfc2 = kernel_params
    B, C, L = x_ncl.shape
    Cp = w1r.shape[1]
    Cred = wfc1.shape[1]
    Lbuf = L + 2 * HALO

    if block_b is None:
        # fold enough batch elements that the matmul M dim (block_b * L) is
        # reasonably large, without exceeding the actual batch.
        block_b = max(1, min(B, pl.cdiv(256, L)))
    Bp = pl.cdiv(B, block_b) * block_b

    # channels-last, channel padded to 128 lanes; the length halo is added
    # inside the kernel (no jnp.pad over length in the wrapper).
    x_blc = jnp.transpose(x_ncl, (0, 2, 1))                    # (B, L, C)
    x_blc = jnp.pad(x_blc, ((0, Bp - B), (0, 0), (0, Cp - C)))  # (Bp, L, Cp)

    const2 = lambda b: (0, 0)
    out = pl.pallas_call(
        basic_block_kernel,
        out_shape=jax.ShapeDtypeStruct((Bp, L, Cp), jnp.float32),
        grid_spec=pltpu.PrefetchScalarGridSpec(
            num_scalar_prefetch=0,
            grid=(Bp // block_b,),
            in_specs=[
                pl.BlockSpec((block_b, L, Cp), lambda b: (b, 0, 0)),
                pl.BlockSpec((K * Cp, Cp), const2),
                pl.BlockSpec((K * Cp, Cp), const2),
                pl.BlockSpec((1, Cp), const2),
                pl.BlockSpec((1, Cp), const2),
                pl.BlockSpec((1, Cp), const2),
                pl.BlockSpec((1, Cp), const2),
                pl.BlockSpec((Cp, Cred), const2),
                pl.BlockSpec((Cred, Cp), const2),
            ],
            out_specs=pl.BlockSpec((block_b, L, Cp), lambda b: (b, 0, 0)),
            scratch_shapes=[
                pltpu.VMEM((block_b, Lbuf, Cp), jnp.float32),
                pltpu.VMEM((block_b, Lbuf, Cp), jnp.float32),
            ],
        ),
        compiler_params=pltpu.CompilerParams(
            dimension_semantics=("parallel",)),  # shards batch across TCs on v7x
    )(x_blc, w1r, w2r, bn1s, bn1b, bn2s, bn2b, wfc1, wfc2)

    out = out[:B, :, :C]                          # drop batch/channel padding
    return jnp.transpose(out, (0, 2, 1))          # back to (B, C, L)


# ----------------------------- parameter setup ------------------------------

def init_params(key, inplanes, planes, reduction=16):
    """Deterministic synthetic parameters matching BasicBlock.__init__ shapes
    (PyTorch layout)."""
    ks = jax.random.split(key, 12)
    conv1_w = jax.random.normal(ks[0], (planes, inplanes, K), jnp.float32) * 0.1
    conv2_w = jax.random.normal(ks[1], (planes, planes, K), jnp.float32) * 0.1

    def bn_fold(kg, kb, km, kv):
        gamma = 1.0 + 0.1 * jax.random.normal(kg, (planes,), jnp.float32)
        beta = 0.1 * jax.random.normal(kb, (planes,), jnp.float32)
        mean = 0.1 * jax.random.normal(km, (planes,), jnp.float32)
        var = jnp.abs(jax.random.normal(kv, (planes,), jnp.float32)) + 0.5
        scale = gamma * jax.lax.rsqrt(var + 1e-5)
        bias = beta - mean * scale
        return scale.reshape(1, planes), bias.reshape(1, planes)

    bn1s, bn1b = bn_fold(ks[2], ks[3], ks[4], ks[5])
    bn2s, bn2b = bn_fold(ks[6], ks[7], ks[8], ks[9])

    cred = planes // reduction
    fc1_w = jax.random.normal(ks[10], (cred, planes), jnp.float32) * 0.2
    fc2_w = jax.random.normal(ks[11], (planes, cred), jnp.float32) * 0.2
    return (conv1_w, conv2_w, bn1s, bn1b, bn2s, bn2b, fc1_w, fc2_w)


def repack_params(torch_params, cpad):
    """Repack PyTorch-layout params into lane-dense, im2col-fused kernel layout."""
    conv1_w, conv2_w, bn1s, bn1b, bn2s, bn2b, fc1_w, fc2_w = torch_params
    planes = conv1_w.shape[0]

    def repack_conv(w):
        co, ci, k = w.shape
        w = jnp.transpose(w, (2, 1, 0))                       # (K, Cin, Cout)
        w = jnp.pad(w, ((0, 0), (0, cpad - ci), (0, cpad - co)))
        return w.reshape(k * cpad, cpad).astype(jnp.bfloat16)  # (K*Cp, Cp)

    pad_vec = lambda v: jnp.pad(v, ((0, 0), (0, cpad - v.shape[1])))
    wfc1 = jnp.pad(fc1_w.T, ((0, cpad - planes), (0, 0)))     # (Cp, Cred)
    wfc2 = jnp.pad(fc2_w.T, ((0, 0), (0, cpad - planes)))     # (Cred, Cp)
    return (repack_conv(conv1_w), repack_conv(conv2_w),
            pad_vec(bn1s), pad_vec(bn1b), pad_vec(bn2s), pad_vec(bn2b),
            wfc1, wfc2)


# --------------------------- pure-JAX reference -----------------------------

def basic_block_ref(x_ncl, torch_params):
    conv1_w, conv2_w, bn1s, bn1b, bn2s, bn2b, fc1_w, fc2_w = torch_params
    dn = ('NCH', 'OIH', 'NCH')

    def conv(x, w):
        # match the kernel: bf16 operands, f32 accumulation
        return jax.lax.conv_general_dilated(
            x.astype(jnp.bfloat16), w.astype(jnp.bfloat16),
            window_strides=(1,), padding=((PAD, PAD),),
            dimension_numbers=dn, preferred_element_type=jnp.float32)

    out = conv(x_ncl, conv1_w)
    out = out * bn1s.reshape(1, -1, 1) + bn1b.reshape(1, -1, 1)
    out = jnp.maximum(out, 0.0)
    out = conv(out, conv2_w)
    out = out * bn2s.reshape(1, -1, 1) + bn2b.reshape(1, -1, 1)
    y = jnp.mean(out, axis=2)                       # (B, C)
    y = jnp.maximum(y @ fc1_w.T, 0.0)
    y = jax.nn.sigmoid(y @ fc2_w.T)
    out = out * y[:, :, None]
    return jnp.maximum(out + x_ncl, 0.0)


if __name__ == "__main__":
    B, C, L = 2, 32, 16          # inplanes == planes == 32, reduction 16 -> hidden 2
    key = jax.random.PRNGKey(0)
    kx, kp = jax.random.split(key)
    x = jax.random.normal(kx, (B, C, L), jnp.float32)

    torch_params = init_params(kp, C, C)
    Cp = pl.cdiv(C, 128) * 128                      # lane-dense channel padding
    kernel_params = repack_params(torch_params, Cp)

    out = jax.block_until_ready(basic_block_pallas(x, kernel_params))
    ref = jax.block_until_ready(basic_block_ref(x, torch_params))

    assert out.shape == (B, C, L)
    max_err = float(jnp.max(jnp.abs(out - ref)))
    assert jnp.allclose(out, ref, rtol=1e-2, atol=1e-2), max_err
    print("KERNEL_OK")
</pallas_src>

<mosaic_0001>
module attributes {stable_mosaic.version = 11 : i64} {
  func.func @basic_block_kernel(%arg0: i32, %arg1: memref<2x16x128xf32, #tpu.memory_space<vmem>>, %arg2: memref<896x128xbf16, #tpu.memory_space<vmem>>, %arg3: memref<896x128xbf16, #tpu.memory_space<vmem>>, %arg4: memref<1x128xf32, #tpu.memory_space<vmem>>, %arg5: memref<1x128xf32, #tpu.memory_space<vmem>>, %arg6: memref<1x128xf32, #tpu.memory_space<vmem>>, %arg7: memref<1x128xf32, #tpu.memory_space<vmem>>, %arg8: memref<128x2xf32, #tpu.memory_space<vmem>>, %arg9: memref<2x128xf32, #tpu.memory_space<vmem>>, %arg10: memref<2x16x128xf32, #tpu.memory_space<vmem>>, %arg11: memref<2x32x128xf32, #tpu.memory_space<vmem>>, %arg12: memref<2x32x128xf32, #tpu.memory_space<vmem>>) attributes {dimension_semantics = [#tpu.dimension_semantics<parallel>], iteration_bounds = array<i64: 1>, scalar_prefetch = 0 : i64, scratch_operands = 2 : i64, tpu.core_type = #tpu.core_type<tc>, window_params = [{transform_indices = @transform_0, window_bounds = array<i64: 2, 16, 128>}, {pipeline_mode = #tpu.pipeline_mode<synchronous>, transform_indices = @transform_1, window_bounds = array<i64: 896, 128>}, {pipeline_mode = #tpu.pipeline_mode<synchronous>, transform_indices = @transform_2, window_bounds = array<i64: 896, 128>}, {pipeline_mode = #tpu.pipeline_mode<synchronous>, transform_indices = @transform_3, window_bounds = array<i64: 1, 128>}, {pipeline_mode = #tpu.pipeline_mode<synchronous>, transform_indices = @transform_4, window_bounds = array<i64: 1, 128>}, {pipeline_mode = #tpu.pipeline_mode<synchronous>, transform_indices = @transform_5, window_bounds = array<i64: 1, 128>}, {pipeline_mode = #tpu.pipeline_mode<synchronous>, transform_indices = @transform_6, window_bounds = array<i64: 1, 128>}, {pipeline_mode = #tpu.pipeline_mode<synchronous>, transform_indices = @transform_7, window_bounds = array<i64: 128, 2>}, {pipeline_mode = #tpu.pipeline_mode<synchronous>, transform_indices = @transform_8, window_bounds = array<i64: 2, 128>}, {transform_indices = @transform_9, window_bounds = array<i64: 2, 16, 128>}]} {
    %cst = arith.constant 0.000000e+00 : f32
    %0 = vector.broadcast %cst : f32 to vector<2x8x128xf32>
    %c0 = arith.constant 0 : index
    %c0_0 = arith.constant 0 : index
    %c0_1 = arith.constant 0 : index
    %1 = vector.load %arg11[%c0, %c0_0, %c0_1] : memref<2x32x128xf32, #tpu.memory_space<vmem>>, vector<2x8x128xf32>
    tpu.vector_store %arg11[%c0, %c0_0, %c0_1], %0 {strides = array<i32>} : memref<2x32x128xf32, #tpu.memory_space<vmem>>, vector<2x8x128xf32>,
    %c0_2 = arith.constant 0 : index
    %c24 = arith.constant 24 : index
    %c0_3 = arith.constant 0 : index
    %2 = vector.load %arg11[%c0_2, %c24, %c0_3] : memref<2x32x128xf32, #tpu.memory_space<vmem>>, vector<2x8x128xf32>
    tpu.vector_store %arg11[%c0_2, %c24, %c0_3], %0 {strides = array<i32>} : memref<2x32x128xf32, #tpu.memory_space<vmem>>, vector<2x8x128xf32>,
    %c0_4 = arith.constant 0 : index
    %c0_5 = arith.constant 0 : index
    %c0_6 = arith.constant 0 : index
    %3 = vector.load %arg12[%c0_4, %c0_5, %c0_6] : memref<2x32x128xf32, #tpu.memory_space<vmem>>, vector<2x8x128xf32>
    tpu.vector_store %arg12[%c0_4, %c0_5, %c0_6], %0 {strides = array<i32>} : memref<2x32x128xf32, #tpu.memory_space<vmem>>, vector<2x8x128xf32>,
    %c0_7 = arith.constant 0 : index
    %c24_8 = arith.constant 24 : index
    %c0_9 = arith.constant 0 : index
    %4 = vector.load %arg12[%c0_7, %c24_8, %c0_9] : memref<2x32x128xf32, #tpu.memory_space<vmem>>, vector<2x8x128xf32>
    tpu.vector_store %arg12[%c0_7, %c24_8, %c0_9], %0 {strides = array<i32>} : memref<2x32x128xf32, #tpu.memory_space<vmem>>, vector<2x8x128xf32>,
    %c0_10 = arith.constant 0 : index
    %c0_11 = arith.constant 0 : index
    %c0_12 = arith.constant 0 : index
    %5 = vector.load %arg1[%c0_10, %c0_11, %c0_12] : memref<2x16x128xf32, #tpu.memory_space<vmem>>, vector<2x16x128xf32>
    %c0_13 = arith.constant 0 : index
    %c8 = arith.constant 8 : index
    %c0_14 = arith.constant 0 : index
    %6 = vector.load %arg11[%c0_13, %c8, %c0_14] : memref<2x32x128xf32, #tpu.memory_space<vmem>>, vector<2x16x128xf32>
    tpu.vector_store %arg11[%c0_13, %c8, %c0_14], %5 {strides = array<i32>} : memref<2x32x128xf32, #tpu.memory_space<vmem>>, vector<2x16x128xf32>,
    %c0_15 = arith.constant 0 : index
    %c5 = arith.constant 5 : index
    %c0_16 = arith.constant 0 : index
    %7 = vector.load %arg11[%c0_15, %c5, %c0_16] : memref<2x32x128xf32, #tpu.memory_space<vmem>>, vector<2x16x128xf32>
    %c0_17 = arith.constant 0 : index
    %c6 = arith.constant 6 : index
    %c0_18 = arith.constant 0 : index
    %8 = vector.load %arg11[%c0_17, %c6, %c0_18] : memref<2x32x128xf32, #tpu.memory_space<vmem>>, vector<2x16x128xf32>
    %c0_19 = arith.constant 0 : index
    %c7 = arith.constant 7 : index
    %c0_20 = arith.constant 0 : index
    %9 = vector.load %arg11[%c0_19, %c7, %c0_20] : memref<2x32x128xf32, #tpu.memory_space<vmem>>, vector<2x16x128xf32>
    %c0_21 = arith.constant 0 : index
    %c8_22 = arith.constant 8 : index
    %c0_23 = arith.constant 0 : index
    %10 = vector.load %arg11[%c0_21, %c8_22, %c0_23] : memref<2x32x128xf32, #tpu.memory_space<vmem>>, vector<2x16x128xf32>
    %c0_24 = arith.constant 0 : index
    %c9 = arith.constant 9 : index
    %c0_25 = arith.constant 0 : index
    %11 = vector.load %arg11[%c0_24, %c9, %c0_25] : memref<2x32x128xf32, #tpu.memory_space<vmem>>, vector<2x16x128xf32>
    %c0_26 = arith.constant 0 : index
    %c10 = arith.constant 10 : index
    %c0_27 = arith.constant 0 : index
    %12 = vector.load %arg11[%c0_26, %c10, %c0_27] : memref<2x32x128xf32, #tpu.memory_space<vmem>>, vector<2x16x128xf32>
    %c0_28 = arith.constant 0 : index
    %c11 = arith.constant 11 : index
    %c0_29 = arith.constant 0 : index
    %13 = vector.load %arg11[%c0_28, %c11, %c0_29] : memref<2x32x128xf32, #tpu.memory_space<vmem>>, vector<2x16x128xf32>
    %14 = tpu.concatenate %7, %8, %9, %10, %11, %12, %13 in 2 : vector<2x16x128xf32>, vector<2x16x128xf32>, vector<2x16x128xf32>, vector<2x16x128xf32>, vector<2x16x128xf32>, vector<2x16x128xf32>, vector<2x16x128xf32> -> vector<2x16x896xf32>
    %15 = vector.shape_cast %14 : vector<2x16x896xf32> to vector<32x896xf32>
    %16 = arith.truncf %15 : vector<32x896xf32> to vector<32x896xbf16>
    %c0_30 = arith.constant 0 : index
    %c0_31 = arith.constant 0 : index
    %17 = vector.load %arg2[%c0_30, %c0_31] : memref<896x128xbf16, #tpu.memory_space<vmem>>, vector<896x128xbf16>
    %cst_32 = arith.constant dense<0.000000e+00> : vector<32x128xf32>
    %18 = tpu.matmul %16, %17, %cst_32 {dimension_numbers = #tpu.dot_dimension_numbers<[1], [0], [0], [1], [0, 0, 1, 1], [], []>} : vector<32x896xbf16>, vector<896x128xbf16>, vector<32x128xf32> -> vector<32x128xf32>
    %c0_33 = arith.constant 0 : index
    %c0_34 = arith.constant 0 : index
    %19 = vector.load %arg4[%c0_33, %c0_34] : memref<1x128xf32, #tpu.memory_space<vmem>>, vector<1x128xf32>
    %20 = vector.broadcast %19 : vector<1x128xf32> to vector<32x128xf32>
    %21 = arith.mulf %18, %20 : vector<32x128xf32>
    %c0_35 = arith.constant 0 : index
    %c0_36 = arith.constant 0 : index
    %22 = vector.load %arg5[%c0_35, %c0_36] : memref<1x128xf32, #tpu.memory_space<vmem>>, vector<1x128xf32>
    %23 = vector.broadcast %22 : vector<1x128xf32> to vector<32x128xf32>
    %24 = arith.addf %21, %23 : vector<32x128xf32>
    %cst_37 = arith.constant 0.000000e+00 : f32
    %25 = vector.broadcast %cst_37 : f32 to vector<32x128xf32>
    %26 = arith.maximumf %24, %25 : vector<32x128xf32>
    %27 = vector.shape_cast %26 : vector<32x128xf32> to vector<2x16x128xf32>
    %c0_38 = arith.constant 0 : index
    %c8_39 = arith.constant 8 : index
    %c0_40 = arith.constant 0 : index
    %28 = vector.load %arg12[%c0_38, %c8_39, %c0_40] : memref<2x32x128xf32, #tpu.memory_space<vmem>>, vector<2x16x128xf32>
    tpu.vector_store %arg12[%c0_38, %c8_39, %c0_40], %27 {strides = array<i32>} : memref<2x32x128xf32, #tpu.memory_space<vmem>>, vector<2x16x128xf32>,
    %c0_41 = arith.constant 0 : index
    %c5_42 = arith.constant 5 : index
    %c0_43 = arith.constant 0 : index
    %29 = vector.load %arg12[%c0_41, %c5_42, %c0_43] : memref<2x32x128xf32, #tpu.memory_space<vmem>>, vector<2x16x128xf32>
    %c0_44 = arith.constant 0 : index
    %c6_45 = arith.constant 6 : index
    %c0_46 = arith.constant 0 : index
    %30 = vector.load %arg12[%c0_44, %c6_45, %c0_46] : memref<2x32x128xf32, #tpu.memory_space<vmem>>, vector<2x16x128xf32>
    %c0_47 = arith.constant 0 : index
    %c7_48 = arith.constant 7 : index
    %c0_49 = arith.constant 0 : index
    %31 = vector.load %arg12[%c0_47, %c7_48, %c0_49] : memref<2x32x128xf32, #tpu.memory_space<vmem>>, vector<2x16x128xf32>
    %c0_50 = arith.constant 0 : index
    %c8_51 = arith.constant 8 : index
    %c0_52 = arith.constant 0 : index
    %32 = vector.load %arg12[%c0_50, %c8_51, %c0_52] : memref<2x32x128xf32, #tpu.memory_space<vmem>>, vector<2x16x128xf32>
    %c0_53 = arith.constant 0 : index
    %c9_54 = arith.constant 9 : index
    %c0_55 = arith.constant 0 : index
    %33 = vector.load %arg12[%c0_53, %c9_54, %c0_55] : memref<2x32x128xf32, #tpu.memory_space<vmem>>, vector<2x16x128xf32>
    %c0_56 = arith.constant 0 : index
    %c10_57 = arith.constant 10 : index
    %c0_58 = arith.constant 0 : index
    %34 = vector.load %arg12[%c0_56, %c10_57, %c0_58] : memref<2x32x128xf32, #tpu.memory_space<vmem>>, vector<2x16x128xf32>
    %c0_59 = arith.constant 0 : index
    %c11_60 = arith.constant 11 : index
    %c0_61 = arith.constant 0 : index
    %35 = vector.load %arg12[%c0_59, %c11_60, %c0_61] : memref<2x32x128xf32, #tpu.memory_space<vmem>>, vector<2x16x128xf32>
    %36 = tpu.concatenate %29, %30, %31, %32, %33, %34, %35 in 2 : vector<2x16x128xf32>, vector<2x16x128xf32>, vector<2x16x128xf32>, vector<2x16x128xf32>, vector<2x16x128xf32>, vector<2x16x128xf32>, vector<2x16x128xf32> -> vector<2x16x896xf32>
    %37 = vector.shape_cast %36 : vector<2x16x896xf32> to vector<32x896xf32>
    %38 = arith.truncf %37 : vector<32x896xf32> to vector<32x896xbf16>
    %c0_62 = arith.constant 0 : index
    %c0_63 = arith.constant 0 : index
    %39 = vector.load %arg3[%c0_62, %c0_63] : memref<896x128xbf16, #tpu.memory_space<vmem>>, vector<896x128xbf16>
    %cst_64 = arith.constant dense<0.000000e+00> : vector<32x128xf32>
    %40 = tpu.matmul %38, %39, %cst_64 {dimension_numbers = #tpu.dot_dimension_numbers<[1], [0], [0], [1], [0, 0, 1, 1], [], []>} : vector<32x896xbf16>, vector<896x128xbf16>, vector<32x128xf32> -> vector<32x128xf32>
    %c0_65 = arith.constant 0 : index
    %c0_66 = arith.constant 0 : index
    %41 = vector.load %arg6[%c0_65, %c0_66] : memref<1x128xf32, #tpu.memory_space<vmem>>, vector<1x128xf32>
    %42 = vector.broadcast %41 : vector<1x128xf32> to vector<32x128xf32>
    %43 = arith.mulf %40, %42 : vector<32x128xf32>
    %c0_67 = arith.constant 0 : index
    %c0_68 = arith.constant 0 : index
    %44 = vector.load %arg7[%c0_67, %c0_68] : memref<1x128xf32, #tpu.memory_space<vmem>>, vector<1x128xf32>
    %45 = vector.broadcast %44 : vector<1x128xf32> to vector<32x128xf32>
    %46 = arith.addf %43, %45 : vector<32x128xf32>
    %47 = vector.shape_cast %46 : vector<32x128xf32> to vector<2x16x128xf32>
    %cst_69 = arith.constant dense<0.000000e+00> : vector<2x128xf32>
    %48 = vector.multi_reduction <add>, %47, %cst_69 [1] : vector<2x16x128xf32> to vector<2x128xf32>
    %cst_70 = arith.constant 1.600000e+01 : f32
    %49 = vector.broadcast %cst_70 : f32 to vector<2x128xf32>
    %50 = arith.divf %48, %49 : vector<2x128xf32>
    %c0_71 = arith.constant 0 : index
    %c0_72 = arith.constant 0 : index
    %51 = vector.load %arg8[%c0_71, %c0_72] : memref<128x2xf32, #tpu.memory_space<vmem>>, vector<128x2xf32>
    %cst_73 = arith.constant dense<0.000000e+00> : vector<2x2xf32>
    %52 = tpu.matmul %50, %51, %cst_73 {dimension_numbers = #tpu.dot_dimension_numbers<[1], [0], [0], [1], [0, 0, 1, 1], [], []>} : vector<2x128xf32>, vector<128x2xf32>, vector<2x2xf32> -> vector<2x2xf32>
    %cst_74 = arith.constant 0.000000e+00 : f32
    %53 = vector.broadcast %cst_74 : f32 to vector<2x2xf32>
    %54 = arith.maximumf %52, %53 : vector<2x2xf32>
    %c0_75 = arith.constant 0 : index
    %c0_76 = arith.constant 0 : index
    %55 = vector.load %arg9[%c0_75, %c0_76] : memref<2x128xf32, #tpu.memory_space<vmem>>, vector<2x128xf32>
    %cst_77 = arith.constant dense<0.000000e+00> : vector<2x128xf32>
    %56 = tpu.matmul %54, %55, %cst_77 {dimension_numbers = #tpu.dot_dimension_numbers<[1], [0], [0], [1], [0, 0, 1, 1], [], []>} : vector<2x2xf32>, vector<2x128xf32>, vector<2x128xf32> -> vector<2x128xf32>
    %57 = arith.negf %56 : vector<2x128xf32>
    %58 = math.exp %57 : vector<2x128xf32>
    %cst_78 = arith.constant 1.000000e+00 : f32
    %59 = vector.broadcast %cst_78 : f32 to vector<2x128xf32>
    %60 = arith.addf %59, %58 : vector<2x128xf32>
    %61 = arith.divf %59, %60 : vector<2x128xf32>
    %62 = vector.shape_cast %61 : vector<2x128xf32> to vector<2x1x128xf32>
    %63 = vector.broadcast %62 : vector<2x1x128xf32> to vector<2x16x128xf32>
    %64 = arith.mulf %47, %63 : vector<2x16x128xf32>
    %65 = arith.addf %64, %5 : vector<2x16x128xf32>
    %cst_79 = arith.constant 0.000000e+00 : f32
    %66 = vector.broadcast %cst_79 : f32 to vector<2x16x128xf32>
    %67 = arith.maximumf %65, %66 : vector<2x16x128xf32>
    %c0_80 = arith.constant 0 : index
    %c0_81 = arith.constant 0 : index
    %c0_82 = arith.constant 0 : index
    %68 = vector.load %arg10[%c0_80, %c0_81, %c0_82] : memref<2x16x128xf32, #tpu.memory_space<vmem>>, vector<2x16x128xf32>
    tpu.vector_store %arg10[%c0_80, %c0_81, %c0_82], %67 {strides = array<i32>} : memref<2x16x128xf32, #tpu.memory_space<vmem>>, vector<2x16x128xf32>,
    return
  }
  func.func @transform_0(%arg0: i32) -> (i32, i32, i32) {
    %c0_i32 = arith.constant 0 : i32
    %c0_i32_0 = arith.constant 0 : i32
    %c0_i32_1 = arith.constant 0 : i32
    return %arg0, %c0_i32, %c0_i32_0 : i32, i32, i32
  }
  func.func @transform_1(%arg0: i32) -> (i32, i32) {
    %c0_i32 = arith.constant 0 : i32
    %c0_i32_0 = arith.constant 0 : i32
    %c0_i32_1 = arith.constant 0 : i32
    return %c0_i32, %c0_i32_0 : i32, i32
  }
  func.func @transform_2(%arg0: i32) -> (i32, i32) {
    %c0_i32 = arith.constant 0 : i32
    %c0_i32_0 = arith.constant 0 : i32
    %c0_i32_1 = arith.constant 0 : i32
    return %c0_i32, %c0_i32_0 : i32, i32
  }
  func.func @transform_3(%arg0: i32) -> (i32, i32) {
    %c0_i32 = arith.constant 0 : i32
    %c0_i32_0 = arith.constant 0 : i32
    %c0_i32_1 = arith.constant 0 : i32
    return %c0_i32, %c0_i32_0 : i32, i32
  }
  func.func @transform_4(%arg0: i32) -> (i32, i32) {
    %c0_i32 = arith.constant 0 : i32
    %c0_i32_0 = arith.constant 0 : i32
    %c0_i32_1 = arith.constant 0 : i32
    return %c0_i32, %c0_i32_0 : i32, i32
  }
  func.func @transform_5(%arg0: i32) -> (i32, i32) {
    %c0_i32 = arith.constant 0 : i32
    %c0_i32_0 = arith.constant 0 : i32
    %c0_i32_1 = arith.constant 0 : i32
    return %c0_i32, %c0_i32_0 : i32, i32
  }
  func.func @transform_6(%arg0: i32) -> (i32, i32) {
    %c0_i32 = arith.constant 0 : i32
    %c0_i32_0 = arith.constant 0 : i32
    %c0_i32_1 = arith.constant 0 : i32
    return %c0_i32, %c0_i32_0 : i32, i32
  }
  func.func @transform_7(%arg0: i32) -> (i32, i32) {
    %c0_i32 = arith.constant 0 : i32
    %c0_i32_0 = arith.constant 0 : i32
    %c0_i32_1 = arith.constant 0 : i32
    return %c0_i32, %c0_i32_0 : i32, i32
  }
  func.func @transform_8(%arg0: i32) -> (i32, i32) {
    %c0_i32 = arith.constant 0 : i32
    %c0_i32_0 = arith.constant 0 : i32
    %c0_i32_1 = arith.constant 0 : i32
    return %c0_i32, %c0_i32_0 : i32, i32
  }
  func.func @transform_9(%arg0: i32) -> (i32, i32, i32) {
    %c0_i32 = arith.constant 0 : i32
    %c0_i32_0 = arith.constant 0 : i32
    %c0_i32_1 = arith.constant 0 : i32
    return %arg0, %c0_i32, %c0_i32_0 : i32, i32, i32
  }
}

</mosaic_0001>

<llo_original>
// kernel: tpu_custom_call.1
$region0: #{tpu_custom_call.1}
  #allocation0 [shape = 'u32[]', space=smem, size = 0x4, offset = 0x4, fixed_abs, tag = 'smem constant byte address 0x4 - core index']
  #allocation1 [shape = 'u32[72,128]{1,0:T(1,128)}', space=vmem, size = 0x9000, scoped, tag = 'internal scratch']
  #allocation2 [shape = 'f32[2,32,128]{2,1,0:T(8,128)}', space=vmem, size = 0x8000, scoped, tag = 'scratch operand']
  #allocation3 [shape = 'f32[2,32,128]{2,1,0:T(8,128)}', space=vmem, size = 0x8000, scoped, tag = 'scratch operand']
  %s0 = inlined_call_operand.vmem [shape: f32[2,16,128], index: 0, kind: input, shape index: {}]
  %s1 = inlined_call_operand.hbm [shape: bf16[896,128], index: 1, kind: input, shape index: {}]
  %s2 = inlined_call_operand.hbm [shape: bf16[896,128], index: 2, kind: input, shape index: {}]
  %s3 = inlined_call_operand.vmem [shape: f32[1,128], index: 3, kind: input, shape index: {}]
  %s4 = inlined_call_operand.vmem [shape: f32[1,128], index: 4, kind: input, shape index: {}]
  %s5 = inlined_call_operand.vmem [shape: f32[1,128], index: 5, kind: input, shape index: {}]
  %s6 = inlined_call_operand.vmem [shape: f32[1,128], index: 6, kind: input, shape index: {}]
  %s7 = inlined_call_operand.vmem [shape: f32[128,2], index: 7, kind: input, shape index: {}]
  %s8 = inlined_call_operand.vmem [shape: f32[2,128], index: 8, kind: input, shape index: {}]
  %s9 = inlined_call_operand.hbm [shape: f32[2,16,128], index: 9, kind: output, shape index: {}]
  %s10 = sld [smem:[#allocation0]]
  $region54: #{tpu_custom_call.1} parent=0
    _
  %s12 = ssub.s32 1, %s10
  %s13 = scalar_select 0, %s12, %s10
  $region1: #{tpu_custom_call.1} parent=0
    #allocation4 [shape = 'u8[229376]{0}', space=vmem, size = 0x38000, scoped, tag = 'input window, operand 1, single buffered']
    #allocation5 [shape = 's32[1]{0}', space=sflag, size = 0x4, scoped, tag = 'scoped memory for tpu_custom_call.1']
    #allocation6 [shape = 's32[1]{0}', space=sflag, size = 0x4, scoped, tag = 'scoped memory for tpu_custom_call.1']
    #allocation7 [shape = 'u8[229376]{0}', space=vmem, size = 0x38000, scoped, tag = 'input window, operand 2, single buffered']
    #allocation8 [shape = 's32[1]{0}', space=sflag, size = 0x4, scoped, tag = 'scoped memory for tpu_custom_call.1']
    #allocation9 [shape = 'u8[16384]{0}', space=vmem, size = 0x4000, scoped, tag = 'output window, operand 0, single buffered']
    %14 = vsyncpa [#allocation5], 0
    %15 = vsyncpa [#allocation8], 0
    %16 = vsyncpa [#allocation6], 0
    // Predicated region
    $region2: #{tpu_custom_call.1} parent=1 // pred_check
      _
    $region3: #{tpu_custom_call.1} parent=1 // pred_check_branch
      %18 = sbr.rel (0) target = $region5
    $region4: #{tpu_custom_call.1} parent=1 // pred_region
      _
    $region5: #{tpu_custom_call.1} parent=1 // pred_fallthru
      _
    // Predicated region
    $region6: #{tpu_custom_call.1} parent=1 // pred_check
      _
    $region7: #{tpu_custom_call.1} parent=1 // pred_check_branch
      %20 = sbr.rel (0) target = $region9
    $region8: #{tpu_custom_call.1} parent=1 // pred_region
      %22 = vsyncadd [#allocation5], 0
      %s23 = sshll.u32 %s1, 4
      %s24 = int_to_ptr.hbm [resolvable:$true] %s23
      %s25 = sshll.u32 [#allocation4], 4
      %s26 = int_to_ptr.vmem [resolvable:$true] %s25
      %31 = dma.hbm_to_vmem [thread:$0]  %s24, 7168, %s26, [#allocation5], 64, 64, 4
    $region9: #{tpu_custom_call.1} parent=1 // pred_fallthru
      _
    // Predicated region
    $region10: #{tpu_custom_call.1} parent=1 // pred_check
      _
    $region11: #{tpu_custom_call.1} parent=1 // pred_check_branch
      %33 = sbr.rel (0) target = $region13
    $region12: #{tpu_custom_call.1} parent=1 // pred_region
      %35 = vsyncadd [#allocation8], 0
      %s36 = sshll.u32 %s2, 4
      %s37 = int_to_ptr.hbm [resolvable:$true] %s36
      %s38 = sshll.u32 [#allocation7], 4
      %s39 = int_to_ptr.vmem [resolvable:$true] %s38
      %44 = dma.hbm_to_vmem [thread:$0]  %s37, 7168, %s39, [#allocation8], 64, 64, 4
    $region13: #{tpu_custom_call.1} parent=1 // pred_fallthru
      _
    // Predicated region
    $region14: #{tpu_custom_call.1} parent=1 // pred_check
      _
    $region15: #{tpu_custom_call.1} parent=1 // pred_check_branch
      %46 = sbr.rel (0) target = $region17
    $region16: #{tpu_custom_call.1} parent=1 // pred_region
      _
    $region17: #{tpu_custom_call.1} parent=1 // pred_fallthru
      _
    // Predicated region
    $region18: #{tpu_custom_call.1} parent=1 // pred_check
      _
    $region19: #{tpu_custom_call.1} parent=1 // pred_check_branch
      %48 = sbr.rel (0) target = $region21
    $region20: #{tpu_custom_call.1} parent=1 // pred_region
      _
    $region21: #{tpu_custom_call.1} parent=1 // pred_fallthru
      _
    // Predicated region
    $region22: #{tpu_custom_call.1} parent=1 // pred_check
      _
    $region23: #{tpu_custom_call.1} parent=1 // pred_check_branch
      %50 = sbr.rel (0) target = $region25
    $region24: #{tpu_custom_call.1} parent=1 // pred_region
      _
    $region25: #{tpu_custom_call.1} parent=1 // pred_fallthru
      _
    // Predicated region
    $region26: #{tpu_custom_call.1} parent=1 // pred_check
      _
    $region27: #{tpu_custom_call.1} parent=1 // pred_check_branch
      %52 = sbr.rel (0) target = $region29
    $region28: #{tpu_custom_call.1} parent=1 // pred_region
      _
    $region29: #{tpu_custom_call.1} parent=1 // pred_fallthru
      _
    // Predicated region
    $region30: #{tpu_custom_call.1} parent=1 // pred_check
      _
    $region31: #{tpu_custom_call.1} parent=1 // pred_check_branch
      %54 = sbr.rel (0) target = $region33
    $region32: #{tpu_custom_call.1} parent=1 // pred_region
      _
    $region33: #{tpu_custom_call.1} parent=1 // pred_fallthru
      _
    // Predicated region
    $region34: #{tpu_custom_call.1} parent=1 // pred_check
      _
    $region35: #{tpu_custom_call.1} parent=1 // pred_check_branch
      %56 = sbr.rel (0) target = $region37
    $region36: #{tpu_custom_call.1} parent=1 // pred_region
      _
    $region37: #{tpu_custom_call.1} parent=1 // pred_fallthru
      _
    // Predicated region
    $region38: #{tpu_custom_call.1} parent=1 // pred_check
      _
    $region39: #{tpu_custom_call.1} parent=1 // pred_check_branch
      %58 = sbr.rel (0) target = $region41
    $region40: #{tpu_custom_call.1} parent=1 // pred_region
      %60 = dma.done [#allocation5], 7168
    $region41: #{tpu_custom_call.1} parent=1 // pred_fallthru
      _
    // Predicated region
    $region42: #{tpu_custom_call.1} parent=1 // pred_check
      _
    $region43: #{tpu_custom_call.1} parent=1 // pred_check_branch
      %62 = sbr.rel (0) target = $region45
    $region44: #{tpu_custom_call.1} parent=1 // pred_region
      %64 = dma.done [#allocation8], 7168
    $region45: #{tpu_custom_call.1} parent=1 // pred_fallthru
      _
    %65 = vst [vmem:[#allocation2] sm:$0xff] 0.0
    %66 = vst [vmem:[#allocation2 + $0x20] sm:$0xff] 0.0
    %67 = vst [vmem:[#allocation2 + $0x18] sm:$0xff] 0.0
    %68 = vst [vmem:[#allocation2 + $0x38] sm:$0xff] 0.0
    %69 = vst [vmem:[#allocation3] sm:$0xff] 0.0
    %70 = vst [vmem:[#allocation3 + $0x20] sm:$0xff] 0.0
    %71 = vst [vmem:[#allocation3 + $0x18] sm:$0xff] 0.0
    %72 = vst [vmem:[#allocation3 + $0x38] sm:$0xff] 0.0
    %v73 = vld [vmem:[%s0] sm:$0xff]
    %v74 = vld [vmem:[%s0 + $0x8] sm:$0xff]
    %v75 = vld [vmem:[%s0 + $0x10] sm:$0xff]
    %v76 = vld [vmem:[%s0 + $0x18] sm:$0xff]
    %77 = vst [vmem:[#allocation2 + $0x8] sm:$0xff] %v73
    %78 = vst [vmem:[#allocation2 + $0x10] sm:$0xff] %v74
    %79 = vst [vmem:[#allocation2 + $0x28] sm:$0xff] %v75
    %80 = vst [vmem:[#allocation2 + $0x30] sm:$0xff] %v76
    %v81 = vld [vmem:[#allocation2 + $0x5] sm:$0xff]
    %v82 = vld [vmem:[#allocation2 + $0xd] sm:$0xff]
    %v83 = vld [vmem:[#allocation2 + $0x25] sm:$0xff]
    %v84 = vld [vmem:[#allocation2 + $0x2d] sm:$0xff]
    %v85 = vld [vmem:[#allocation2 + $0x6] sm:$0xff]
    %v86 = vld [vmem:[#allocation2 + $0xe] sm:$0xff]
    %v87 = vld [vmem:[#allocation2 + $0x26] sm:$0xff]
    %v88 = vld [vmem:[#allocation2 + $0x2e] sm:$0xff]
    %v89 = vld [vmem:[#allocation2 + $0x7] sm:$0xff]
    %v90 = vld [vmem:[#allocation2 + $0xf] sm:$0xff]
    %v91 = vld [vmem:[#allocation2 + $0x27] sm:$0xff]
    %v92 = vld [vmem:[#allocation2 + $0x2f] sm:$0xff]
    %v93 = vld [vmem:[#allocation2 + $0x8] sm:$0xff]
    %v94 = vld [vmem:[#allocation2 + $0x10] sm:$0xff]
    %v95 = vld [vmem:[#allocation2 + $0x28] sm:$0xff]
    %v96 = vld [vmem:[#allocation2 + $0x30] sm:$0xff]
    %v97 = vld [vmem:[#allocation2 + $0x9] sm:$0xff]
    %v98 = vld [vmem:[#allocation2 + $0x11] sm:$0xff]
    %v99 = vld [vmem:[#allocation2 + $0x29] sm:$0xff]
    %v100 = vld [vmem:[#allocation2 + $0x31] sm:$0xff]
    %v101 = vld [vmem:[#allocation2 + $0xa] sm:$0xff]
    %v102 = vld [vmem:[#allocation2 + $0x12] sm:$0xff]
    %v103 = vld [vmem:[#allocation2 + $0x2a] sm:$0xff]
    %v104 = vld [vmem:[#allocation2 + $0x32] sm:$0xff]
    %v105 = vld [vmem:[#allocation2 + $0xb] sm:$0xff]
    %v106 = vld [vmem:[#allocation2 + $0x13] sm:$0xff]
    %v107 = vld [vmem:[#allocation2 + $0x2b] sm:$0xff]
    %v108 = vld [vmem:[#allocation2 + $0x33] sm:$0xff]
    %v109 = vpack.c.bf16 %v82, %v81
    %v110 = vpack.c.bf16 %v86, %v85
    %v111 = vpack.c.bf16 %v90, %v89
    %v112 = vpack.c.bf16 %v94, %v93
    %v113 = vpack.c.bf16 %v98, %v97
    %v114 = vpack.c.bf16 %v102, %v101
    %v115 = vpack.c.bf16 %v106, %v105
    %v116 = vpack.c.bf16 %v84, %v83
    %v117 = vpack.c.bf16 %v88, %v87
    %v118 = vpack.c.bf16 %v92, %v91
    %v119 = vpack.c.bf16 %v96, %v95
    %v120 = vpack.c.bf16 %v100, %v99
    %v121 = vpack.c.bf16 %v104, %v103
    %v122 = vpack.c.bf16 %v108, %v107
    %v123 = vld [vmem:[#allocation4] sm:$0xf]
    %v124 = vld [vmem:[#allocation4 + $0x4] sm:$0xf]
    %v125 = vld [vmem:[#allocation4 + $0x8] sm:$0xf]
    %v126 = vld [vmem:[#allocation4 + $0xc] sm:$0xf]
    %v127 = vld [vmem:[#allocation4 + $0x10] sm:$0xf]
    %v128 = vld [vmem:[#allocation4 + $0x14] sm:$0xf]
    %v129 = vld [vmem:[#allocation4 + $0x18] sm:$0xf]
    %v130 = vld [vmem:[#allocation4 + $0x1c] sm:$0xf]
    %v131 = vld [vmem:[#allocation4 + $0x20] sm:$0xf]
    %v132 = vld [vmem:[#allocation4 + $0x24] sm:$0xf]
    %v133 = vld [vmem:[#allocation4 + $0x28] sm:$0xf]
    %v134 = vld [vmem:[#allocation4 + $0x2c] sm:$0xf]
    %v135 = vld [vmem:[#allocation4 + $0x30] sm:$0xf]
    %v136 = vld [vmem:[#allocation4 + $0x34] sm:$0xf]
    %v137 = vld [vmem:[#allocation4 + $0x38] sm:$0xf]
    %v138 = vld [vmem:[#allocation4 + $0x3c] sm:$0xf]
    %v139 = vld [vmem:[#allocation4 + $0x40] sm:$0xf]
    %v140 = vld [vmem:[#allocation4 + $0x44] sm:$0xf]
    %v141 = vld [vmem:[#allocation4 + $0x48] sm:$0xf]
    %v142 = vld [vmem:[#allocation4 + $0x4c] sm:$0xf]
    %v143 = vld [vmem:[#allocation4 + $0x50] sm:$0xf]
    %v144 = vld [vmem:[#allocation4 + $0x54] sm:$0xf]
    %v145 = vld [vmem:[#allocation4 + $0x58] sm:$0xf]
    %v146 = vld [vmem:[#allocation4 + $0x5c] sm:$0xf]
    %v147 = vld [vmem:[#allocation4 + $0x60] sm:$0xf]
    %v148 = vld [vmem:[#allocation4 + $0x64] sm:$0xf]
    %v149 = vld [vmem:[#allocation4 + $0x68] sm:$0xf]
    %v150 = vld [vmem:[#allocation4 + $0x6c] sm:$0xf]
    %v151 = vld [vmem:[#allocation4 + $0x70] sm:$0xf]
    %v152 = vld [vmem:[#allocation4 + $0x74] sm:$0xf]
    %v153 = vld [vmem:[#allocation4 + $0x78] sm:$0xf]
    %v154 = vld [vmem:[#allocation4 + $0x7c] sm:$0xf]
    %v155 = vld [vmem:[#allocation4 + $0x80] sm:$0xf]
    %v156 = vld [vmem:[#allocation4 + $0x84] sm:$0xf]
    %v157 = vld [vmem:[#allocation4 + $0x88] sm:$0xf]
    %v158 = vld [vmem:[#allocation4 + $0x8c] sm:$0xf]
    %v159 = vld [vmem:[#allocation4 + $0x90] sm:$0xf]
    %v160 = vld [vmem:[#allocation4 + $0x94] sm:$0xf]
    %v161 = vld [vmem:[#allocation4 + $0x98] sm:$0xf]
    %v162 = vld [vmem:[#allocation4 + $0x9c] sm:$0xf]
    %v163 = vld [vmem:[#allocation4 + $0xa0] sm:$0xf]
    %v164 = vld [vmem:[#allocation4 + $0xa4] sm:$0xf]
    %v165 = vld [vmem:[#allocation4 + $0xa8] sm:$0xf]
    %v166 = vld [vmem:[#allocation4 + $0xac] sm:$0xf]
    %v167 = vld [vmem:[#allocation4 + $0xb0] sm:$0xf]
    %v168 = vld [vmem:[#allocation4 + $0xb4] sm:$0xf]
    %v169 = vld [vmem:[#allocation4 + $0xb8] sm:$0xf]
    %v170 = vld [vmem:[#allocation4 + $0xbc] sm:$0xf]
    %v171 = vld [vmem:[#allocation4 + $0xc0] sm:$0xf]
    %v172 = vld [vmem:[#allocation4 + $0xc4] sm:$0xf]
    %v173 = vld [vmem:[#allocation4 + $0xc8] sm:$0xf]
    %v174 = vld [vmem:[#allocation4 + $0xcc] sm:$0xf]
    %v175 = vld [vmem:[#allocation4 + $0xd0] sm:$0xf]
    %v176 = vld [vmem:[#allocation4 + $0xd4] sm:$0xf]
    %v177 = vld [vmem:[#allocation4 + $0xd8] sm:$0xf]
    %v178 = vld [vmem:[#allocation4 + $0xdc] sm:$0xf]
    %v179 = vld [vmem:[#allocation4 + $0xe0] sm:$0xf]
    %v180 = vld [vmem:[#allocation4 + $0xe4] sm:$0xf]
    %v181 = vld [vmem:[#allocation4 + $0xe8] sm:$0xf]
    %v182 = vld [vmem:[#allocation4 + $0xec] sm:$0xf]
    %v183 = vld [vmem:[#allocation4 + $0xf0] sm:$0xf]
    %v184 = vld [vmem:[#allocation4 + $0xf4] sm:$0xf]
    %v185 = vld [vmem:[#allocation4 + $0xf8] sm:$0xf]
    %v186 = vld [vmem:[#allocation4 + $0xfc] sm:$0xf]
    %v187 = vld [vmem:[#allocation4 + $0x100] sm:$0xf]
    %v188 = vld [vmem:[#allocation4 + $0x104] sm:$0xf]
    %v189 = vld [vmem:[#allocation4 + $0x108] sm:$0xf]
    %v190 = vld [vmem:[#allocation4 + $0x10c] sm:$0xf]
    %v191 = vld [vmem:[#allocation4 + $0x110] sm:$0xf]
    %v192 = vld [vmem:[#allocation4 + $0x114] sm:$0xf]
    %v193 = vld [vmem:[#allocation4 + $0x118] sm:$0xf]
    %v194 = vld [vmem:[#allocation4 + $0x11c] sm:$0xf]
    %v195 = vld [vmem:[#allocation4 + $0x120] sm:$0xf]
    %v196 = vld [vmem:[#allocation4 + $0x124] sm:$0xf]
    %v197 = vld [vmem:[#allocation4 + $0x128] sm:$0xf]
    %v198 = vld [vmem:[#allocation4 + $0x12c] sm:$0xf]
    %v199 = vld [vmem:[#allocation4 + $0x130] sm:$0xf]
    %v200 = vld [vmem:[#allocation4 + $0x134] sm:$0xf]
    %v201 = vld [vmem:[#allocation4 + $0x138] sm:$0xf]
    %v202 = vld [vmem:[#allocation4 + $0x13c] sm:$0xf]
    %v203 = vld [vmem:[#allocation4 + $0x140] sm:$0xf]
    %v204 = vld [vmem:[#allocation4 + $0x144] sm:$0xf]
    %v205 = vld [vmem:[#allocation4 + $0x148] sm:$0xf]
    %v206 = vld [vmem:[#allocation4 + $0x14c] sm:$0xf]
    %v207 = vld [vmem:[#allocation4 + $0x150] sm:$0xf]
    %v208 = vld [vmem:[#allocation4 + $0x154] sm:$0xf]
    %v209 = vld [vmem:[#allocation4 + $0x158] sm:$0xf]
    %v210 = vld [vmem:[#allocation4 + $0x15c] sm:$0xf]
    %v211 = vld [vmem:[#allocation4 + $0x160] sm:$0xf]
    %v212 = vld [vmem:[#allocation4 + $0x164] sm:$0xf]
    %v213 = vld [vmem:[#allocation4 + $0x168] sm:$0xf]
    %v214 = vld [vmem:[#allocation4 + $0x16c] sm:$0xf]
    %v215 = vld [vmem:[#allocation4 + $0x170] sm:$0xf]
    %v216 = vld [vmem:[#allocation4 + $0x174] sm:$0xf]
    %v217 = vld [vmem:[#allocation4 + $0x178] sm:$0xf]
    %v218 = vld [vmem:[#allocation4 + $0x17c] sm:$0xf]
    %v219 = vld [vmem:[#allocation4 + $0x180] sm:$0xf]
    %v220 = vld [vmem:[#allocation4 + $0x184] sm:$0xf]
    %v221 = vld [vmem:[#allocation4 + $0x188] sm:$0xf]
    %v222 = vld [vmem:[#allocation4 + $0x18c] sm:$0xf]
    %v223 = vld [vmem:[#allocation4 + $0x190] sm:$0xf]
    %v224 = vld [vmem:[#allocation4 + $0x194] sm:$0xf]
    %v225 = vld [vmem:[#allocation4 + $0x198] sm:$0xf]
    %v226 = vld [vmem:[#allocation4 + $0x19c] sm:$0xf]
    %v227 = vld [vmem:[#allocation4 + $0x1a0] sm:$0xf]
    %v228 = vld [vmem:[#allocation4 + $0x1a4] sm:$0xf]
    %v229 = vld [vmem:[#allocation4 + $0x1a8] sm:$0xf]
    %v230 = vld [vmem:[#allocation4 + $0x1ac] sm:$0xf]
    %v231 = vld [vmem:[#allocation4 + $0x1b0] sm:$0xf]
    %v232 = vld [vmem:[#allocation4 + $0x1b4] sm:$0xf]
    %v233 = vld [vmem:[#allocation4 + $0x1b8] sm:$0xf]
    %v234 = vld [vmem:[#allocation4 + $0x1bc] sm:$0xf]
    %v347 = vunpack.c.l.b16 %v123
    %v348 = vunpack.c.l.b16 %v124
    %v349 = vunpack.c.l.b16 %v125
    %v350 = vunpack.c.l.b16 %v126
    %v351 = vunpack.c.l.b16 %v127
    %v352 = vunpack.c.l.b16 %v128
    %v353 = vunpack.c.l.b16 %v129
    %v354 = vunpack.c.l.b16 %v130
    %v355 = vunpack.c.l.b16 %v131
    %v356 = vunpack.c.l.b16 %v132
    %v357 = vunpack.c.l.b16 %v133
    %v358 = vunpack.c.l.b16 %v134
    %v359 = vunpack.c.l.b16 %v135
    %v360 = vunpack.c.l.b16 %v136
    %v361 = vunpack.c.l.b16 %v137
    %v362 = vunpack.c.l.b16 %v138
    %v363 = vunpack.c.l.b16 %v139
    %v364 = vunpack.c.l.b16 %v140
    %v365 = vunpack.c.l.b16 %v141
    %v366 = vunpack.c.l.b16 %v142
    %v367 = vunpack.c.l.b16 %v143
    %v368 = vunpack.c.l.b16 %v144
    %v369 = vunpack.c.l.b16 %v145
    %v370 = vunpack.c.l.b16 %v146
    %v371 = vunpack.c.l.b16 %v147
    %v372 = vunpack.c.l.b16 %v148
    %v373 = vunpack.c.l.b16 %v149
    %v374 = vunpack.c.l.b16 %v150
    %v375 = vunpack.c.l.b16 %v151
    %v376 = vunpack.c.l.b16 %v152
    %v377 = vunpack.c.l.b16 %v153
    %v378 = vunpack.c.l.b16 %v154
    %v379 = vunpack.c.l.b16 %v155
    %v380 = vunpack.c.l.b16 %v156
    %v381 = vunpack.c.l.b16 %v157
    %v382 = vunpack.c.l.b16 %v158
    %v383 = vunpack.c.l.b16 %v159
    %v384 = vunpack.c.l.b16 %v160
    %v385 = vunpack.c.l.b16 %v161
    %v386 = vunpack.c.l.b16 %v162
    %v387 = vunpack.c.l.b16 %v163
    %v388 = vunpack.c.l.b16 %v164
    %v389 = vunpack.c.l.b16 %v165
    %v390 = vunpack.c.l.b16 %v166
    %v391 = vunpack.c.l.b16 %v167
    %v392 = vunpack.c.l.b16 %v168
    %v393 = vunpack.c.l.b16 %v169
    %v394 = vunpack.c.l.b16 %v170
    %v395 = vunpack.c.l.b16 %v171
    %v396 = vunpack.c.l.b16 %v172
    %v397 = vunpack.c.l.b16 %v173
    %v398 = vunpack.c.l.b16 %v174
    %v399 = vunpack.c.l.b16 %v175
    %v400 = vunpack.c.l.b16 %v176
    %v401 = vunpack.c.l.b16 %v177
    %v402 = vunpack.c.l.b16 %v178
    %v403 = vunpack.c.l.b16 %v179
    %v404 = vunpack.c.l.b16 %v180
    %v405 = vunpack.c.l.b16 %v181
    %v406 = vunpack.c.l.b16 %v182
    %v407 = vunpack.c.l.b16 %v183
    %v408 = vunpack.c.l.b16 %v184
    %v409 = vunpack.c.l.b16 %v185
    %v410 = vunpack.c.l.b16 %v186
    %v411 = vunpack.c.l.b16 %v187
    %v412 = vunpack.c.l.b16 %v188
    %v413 = vunpack.c.l.b16 %v189
    %v414 = vunpack.c.l.b16 %v190
    %v415 = vunpack.c.l.b16 %v191
    %v416 = vunpack.c.l.b16 %v192
    %v417 = vunpack.c.l.b16 %v193
    %v418 = vunpack.c.l.b16 %v194
    %v419 = vunpack.c.l.b16 %v195
    %v420 = vunpack.c.l.b16 %v196
    %v421 = vunpack.c.l.b16 %v197
    %v422 = vunpack.c.l.b16 %v198
    %v423 = vunpack.c.l.b16 %v199
    %v424 = vunpack.c.l.b16 %v200
    %v425 = vunpack.c.l.b16 %v201
    %v426 = vunpack.c.l.b16 %v202
    %v427 = vunpack.c.l.b16 %v203
    %v428 = vunpack.c.l.b16 %v204
    %v429 = vunpack.c.l.b16 %v205
    %v430 = vunpack.c.l.b16 %v206
    %v431 = vunpack.c.l.b16 %v207
    %v432 = vunpack.c.l.b16 %v208
    %v433 = vunpack.c.l.b16 %v209
    %v434 = vunpack.c.l.b16 %v210
    %v435 = vunpack.c.l.b16 %v211
    %v436 = vunpack.c.l.b16 %v212
    %v437 = vunpack.c.l.b16 %v213
    %v438 = vunpack.c.l.b16 %v214
    %v439 = vunpack.c.l.b16 %v215
    %v440 = vunpack.c.l.b16 %v216
    %v441 = vunpack.c.l.b16 %v217
    %v442 = vunpack.c.l.b16 %v218
    %v443 = vunpack.c.l.b16 %v219
    %v444 = vunpack.c.l.b16 %v220
    %v445 = vunpack.c.l.b16 %v221
    %v446 = vunpack.c.l.b16 %v222
    %v447 = vunpack.c.l.b16 %v223
    %v448 = vunpack.c.l.b16 %v224
    %v449 = vunpack.c.l.b16 %v225
    %v450 = vunpack.c.l.b16 %v226
    %v451 = vunpack.c.l.b16 %v227
    %v452 = vunpack.c.l.b16 %v228
    %v453 = vunpack.c.l.b16 %v229
    %v454 = vunpack.c.l.b16 %v230
    %v455 = vunpack.c.l.b16 %v231
    %v456 = vunpack.c.l.b16 %v232
    %v457 = vunpack.c.l.b16 %v233
    %v458 = vunpack.c.l.b16 %v234
    %v459 = vpack.c.b16 %v348, %v347
    %v460 = vpack.c.b16 %v350, %v349
    %v461 = vpack.c.b16 %v352, %v351
    %v462 = vpack.c.b16 %v354, %v353
    %v463 = vpack.c.b16 %v356, %v355
    %v464 = vpack.c.b16 %v358, %v357
    %v465 = vpack.c.b16 %v360, %v359
    %v466 = vpack.c.b16 %v362, %v361
    %v467 = vpack.c.b16 %v364, %v363
    %v468 = vpack.c.b16 %v366, %v365
    %v469 = vpack.c.b16 %v368, %v367
    %v470 = vpack.c.b16 %v370, %v369
    %v471 = vpack.c.b16 %v372, %v371
    %v472 = vpack.c.b16 %v374, %v373
    %v473 = vpack.c.b16 %v376, %v375
    %v474 = vpack.c.b16 %v378, %v377
    %v475 = vpack.c.b16 %v380, %v379
    %v476 = vpack.c.b16 %v382, %v381
    %v477 = vpack.c.b16 %v384, %v383
    %v478 = vpack.c.b16 %v386, %v385
    %v479 = vpack.c.b16 %v388, %v387
    %v480 = vpack.c.b16 %v390, %v389
    %v481 = vpack.c.b16 %v392, %v391
    %v482 = vpack.c.b16 %v394, %v393
    %v483 = vpack.c.b16 %v396, %v395
    %v484 = vpack.c.b16 %v398, %v397
    %v485 = vpack.c.b16 %v400, %v399
    %v486 = vpack.c.b16 %v402, %v401
    %v487 = vpack.c.b16 %v404, %v403
    %v488 = vpack.c.b16 %v406, %v405
    %v489 = vpack.c.b16 %v408, %v407
    %v490 = vpack.c.b16 %v410, %v409
    %v491 = vpack.c.b16 %v412, %v411
    %v492 = vpack.c.b16 %v414, %v413
    %v493 = vpack.c.b16 %v416, %v415
    %v494 = vpack.c.b16 %v418, %v417
    %v495 = vpack.c.b16 %v420, %v419
    %v496 = vpack.c.b16 %v422, %v421
    %v497 = vpack.c.b16 %v424, %v423
    %v498 = vpack.c.b16 %v426, %v425
    %v499 = vpack.c.b16 %v428, %v427
    %v500 = vpack.c.b16 %v430, %v429
    %v501 = vpack.c.b16 %v432, %v431
    %v502 = vpack.c.b16 %v434, %v433
    %v503 = vpack.c.b16 %v436, %v435
    %v504 = vpack.c.b16 %v438, %v437
    %v505 = vpack.c.b16 %v440, %v439
    %v506 = vpack.c.b16 %v442, %v441
    %v507 = vpack.c.b16 %v444, %v443
    %v508 = vpack.c.b16 %v446, %v445
    %v509 = vpack.c.b16 %v448, %v447
    %v510 = vpack.c.b16 %v450, %v449
    %v511 = vpack.c.b16 %v452, %v451
    %v512 = vpack.c.b16 %v454, %v453
    %v513 = vpack.c.b16 %v456, %v455
    %v514 = vpack.c.b16 %v458, %v457
    %571 = vmatpush.bf16.msra.mxu0 %v466
    %572 = vmatpush.bf16.msra.mxu0 %v465
    %573 = vmatpush.bf16.msra.mxu0 %v464
    %574 = vmatpush.bf16.msra.mxu0 %v463
    %575 = vmatpush.bf16.msra.mxu0 %v462
    %576 = vmatpush.bf16.msra.mxu0 %v461
    %577 = vmatpush.bf16.msra.mxu0 %v460
    %578 = vmatpush.bf16.msra.mxu0 %v459
    %579 = vmatmul.bf16.gmra.mxu0 %v109
    %v580 = vpop.f32.mrf.mxu0
    %v581 = vadd.f32 0.0, %v580
    %v582 = vpop.f32.mrf.mxu0
    %v583 = vadd.f32 0.0, %v582
    %584 = vmatmul.bf16.gmra.mxu0 %v116
    %v585 = vpop.f32.mrf.mxu0
    %v586 = vadd.f32 0.0, %v585
    %v587 = vpop.f32.mrf.mxu0
    %v588 = vadd.f32 0.0, %v587
    %589 = vdwg.mxu0
    %590 = vmatpush.bf16.msra.mxu0 %v474
    %591 = vmatpush.bf16.msra.mxu0 %v473
    %592 = vmatpush.bf16.msra.mxu0 %v472
    %593 = vmatpush.bf16.msra.mxu0 %v471
    %594 = vmatpush.bf16.msra.mxu0 %v470
    %595 = vmatpush.bf16.msra.mxu0 %v469
    %596 = vmatpush.bf16.msra.mxu0 %v468
    %597 = vmatpush.bf16.msra.mxu0 %v467
    %598 = vmatmul.bf16.gmra.mxu0 %v110
    %v599 = vpop.f32.mrf.mxu0
    %v600 = vadd.f32 %v581, %v599
    %v601 = vpop.f32.mrf.mxu0
    %v602 = vadd.f32 %v583, %v601
    %603 = vmatmul.bf16.gmra.mxu0 %v117
    %v604 = vpop.f32.mrf.mxu0
    %v605 = vadd.f32 %v586, %v604
    %v606 = vpop.f32.mrf.mxu0
    %v607 = vadd.f32 %v588, %v606
    %608 = vdwg.mxu0
    %609 = vmatpush.bf16.msra.mxu0 %v482
    %610 = vmatpush.bf16.msra.mxu0 %v481
    %611 = vmatpush.bf16.msra.mxu0 %v480
    %612 = vmatpush.bf16.msra.mxu0 %v479
    %613 = vmatpush.bf16.msra.mxu0 %v478
    %614 = vmatpush.bf16.msra.mxu0 %v477
    %615 = vmatpush.bf16.msra.mxu0 %v476
    %616 = vmatpush.bf16.msra.mxu0 %v475
    %617 = vmatmul.bf16.gmra.mxu0 %v111
    %v618 = vpop.f32.mrf.mxu0
    %v619 = vadd.f32 %v600, %v618
    %v620 = vpop.f32.mrf.mxu0
    %v621 = vadd.f32 %v602, %v620
    %622 = vmatmul.bf16.gmra.mxu0 %v118
    %v623 = vpop.f32.mrf.mxu0
    %v624 = vadd.f32 %v605, %v623
    %v625 = vpop.f32.mrf.mxu0
    %v626 = vadd.f32 %v607, %v625
    %627 = vdwg.mxu0
    %628 = vmatpush.bf16.msra.mxu0 %v490
    %629 = vmatpush.bf16.msra.mxu0 %v489
    %630 = vmatpush.bf16.msra.mxu0 %v488
    %631 = vmatpush.bf16.msra.mxu0 %v487
    %632 = vmatpush.bf16.msra.mxu0 %v486
    %633 = vmatpush.bf16.msra.mxu0 %v485
    %634 = vmatpush.bf16.msra.mxu0 %v484
    %635 = vmatpush.bf16.msra.mxu0 %v483
    %636 = vmatmul.bf16.gmra.mxu0 %v112
    %v637 = vpop.f32.mrf.mxu0
    %v638 = vadd.f32 %v619, %v637
    %v639 = vpop.f32.mrf.mxu0
    %v640 = vadd.f32 %v621, %v639
    %641 = vmatmul.bf16.gmra.mxu0 %v119
    %v642 = vpop.f32.mrf.mxu0
    %v643 = vadd.f32 %v624, %v642
    %v644 = vpop.f32.mrf.mxu0
    %v645 = vadd.f32 %v626, %v644
    %646 = vdwg.mxu0
    %647 = vmatpush.bf16.msra.mxu0 %v498
    %648 = vmatpush.bf16.msra.mxu0 %v497
    %649 = vmatpush.bf16.msra.mxu0 %v496
    %650 = vmatpush.bf16.msra.mxu0 %v495
    %651 = vmatpush.bf16.msra.mxu0 %v494
    %652 = vmatpush.bf16.msra.mxu0 %v493
    %653 = vmatpush.bf16.msra.mxu0 %v492
    %654 = vmatpush.bf16.msra.mxu0 %v491
    %655 = vmatmul.bf16.gmra.mxu0 %v113
    %v656 = vpop.f32.mrf.mxu0
    %v657 = vadd.f32 %v638, %v656
    %v658 = vpop.f32.mrf.mxu0
    %v659 = vadd.f32 %v640, %v658
    %660 = vmatmul.bf16.gmra.mxu0 %v120
    %v661 = vpop.f32.mrf.mxu0
    %v662 = vadd.f32 %v643, %v661
    %v663 = vpop.f32.mrf.mxu0
    %v664 = vadd.f32 %v645, %v663
    %665 = vdwg.mxu0
    %666 = vmatpush.bf16.msra.mxu0 %v506
    %667 = vmatpush.bf16.msra.mxu0 %v505
    %668 = vmatpush.bf16.msra.mxu0 %v504
    %669 = vmatpush.bf16.msra.mxu0 %v503
    %670 = vmatpush.bf16.msra.mxu0 %v502
    %671 = vmatpush.bf16.msra.mxu0 %v501
    %672 = vmatpush.bf16.msra.mxu0 %v500
    %673 = vmatpush.bf16.msra.mxu0 %v499
    %674 = vmatmul.bf16.gmra.mxu0 %v114
    %v675 = vpop.f32.mrf.mxu0
    %v676 = vadd.f32 %v657, %v675
    %v677 = vpop.f32.mrf.mxu0
    %v678 = vadd.f32 %v659, %v677
    %679 = vmatmul.bf16.gmra.mxu0 %v121
    %v680 = vpop.f32.mrf.mxu0
    %v681 = vadd.f32 %v662, %v680
    %v682 = vpop.f32.mrf.mxu0
    %v683 = vadd.f32 %v664, %v682
    %684 = vdwg.mxu0
    %685 = vmatpush.bf16.msra.mxu0 %v514
    %686 = vmatpush.bf16.msra.mxu0 %v513
    %687 = vmatpush.bf16.msra.mxu0 %v512
    %688 = vmatpush.bf16.msra.mxu0 %v511
    %689 = vmatpush.bf16.msra.mxu0 %v510
    %690 = vmatpush.bf16.msra.mxu0 %v509
    %691 = vmatpush.bf16.msra.mxu0 %v508
    %692 = vmatpush.bf16.msra.mxu0 %v507
    %693 = vmatmul.bf16.gmra.mxu0 %v115
    %v694 = vpop.f32.mrf.mxu0
    %v695 = vadd.f32 %v676, %v694
    %v696 = vpop.f32.mrf.mxu0
    %v697 = vadd.f32 %v678, %v696
    %698 = vmatmul.bf16.gmra.mxu0 %v122
    %v699 = vpop.f32.mrf.mxu0
    %v700 = vadd.f32 %v681, %v699
    %v701 = vpop.f32.mrf.mxu0
    %v702 = vadd.f32 %v683, %v701
    %703 = vdwg.mxu0
    %v704 = vld [vmem:[%s3] sm:$0x1]
    %v706 = vperm.slane %v704, 0
    %v708 = vmul.f32 %v695, %v706
    %v709 = vmul.f32 %v697, %v706
    %v710 = vmul.f32 %v700, %v706
    %v711 = vmul.f32 %v702, %v706
    %v712 = vld [vmem:[%s4] sm:$0x1]
    %v714 = vperm.slane %v712, 0
    %v716 = vadd.f32 %v708, %v714
    %v717 = vadd.f32 %v709, %v714
    %v718 = vadd.f32 %v710, %v714
    %v719 = vadd.f32 %v711, %v714
    %v720 = vmax.f32 %v716, 0.0
    %v721 = vmax.f32 %v717, 0.0
    %v722 = vmax.f32 %v718, 0.0
    %v723 = vmax.f32 %v719, 0.0
    %724 = vst [vmem:[#allocation3 + $0x8] sm:$0xff] %v720
    %725 = vst [vmem:[#allocation3 + $0x10] sm:$0xff] %v721
    %726 = vst [vmem:[#allocation3 + $0x28] sm:$0xff] %v722
    %727 = vst [vmem:[#allocation3 + $0x30] sm:$0xff] %v723
    %v728 = vld [vmem:[#allocation3 + $0x5] sm:$0xff]
    %v729 = vld [vmem:[#allocation3 + $0xd] sm:$0xff]
    %v730 = vld [vmem:[#allocation3 + $0x25] sm:$0xff]
    %v731 = vld [vmem:[#allocation3 + $0x2d] sm:$0xff]
    %v732 = vld [vmem:[#allocation3 + $0x6] sm:$0xff]
    %v733 = vld [vmem:[#allocation3 + $0xe] sm:$0xff]
    %v734 = vld [vmem:[#allocation3 + $0x26] sm:$0xff]
    %v735 = vld [vmem:[#allocation3 + $0x2e] sm:$0xff]
    %v736 = vld [vmem:[#allocation3 + $0x7] sm:$0xff]
    %v737 = vld [vmem:[#allocation3 + $0xf] sm:$0xff]
    %v738 = vld [vmem:[#allocation3 + $0x27] sm:$0xff]
    %v739 = vld [vmem:[#allocation3 + $0x2f] sm:$0xff]
    %v740 = vld [vmem:[#allocation3 + $0x8] sm:$0xff]
    %v741 = vld [vmem:[#allocation3 + $0x10] sm:$0xff]
    %v742 = vld [vmem:[#allocation3 + $0x28] sm:$0xff]
    %v743 = vld [vmem:[#allocation3 + $0x30] sm:$0xff]
    %v744 = vld [vmem:[#allocation3 + $0x9] sm:$0xff]
    %v745 = vld [vmem:[#allocation3 + $0x11] sm:$0xff]
    %v746 = vld [vmem:[#allocation3 + $0x29] sm:$0xff]
    %v747 = vld [vmem:[#allocation3 + $0x31] sm:$0xff]
    %v748 = vld [vmem:[#allocation3 + $0xa] sm:$0xff]
    %v749 = vld [vmem:[#allocation3 + $0x12] sm:$0xff]
    %v750 = vld [vmem:[#allocation3 + $0x2a] sm:$0xff]
    %v751 = vld [vmem:[#allocation3 + $0x32] sm:$0xff]
    %v752 = vld [vmem:[#allocation3 + $0xb] sm:$0xff]
    %v753 = vld [vmem:[#allocation3 + $0x13] sm:$0xff]
    %v754 = vld [vmem:[#allocation3 + $0x2b] sm:$0xff]
    %v755 = vld [vmem:[#allocation3 + $0x33] sm:$0xff]
    %v756 = vpack.c.bf16 %v729, %v728
    %v757 = vpack.c.bf16 %v733, %v732
    %v758 = vpack.c.bf16 %v737, %v736
    %v759 = vpack.c.bf16 %v741, %v740
    %v760 = vpack.c.bf16 %v745, %v744
    %v761 = vpack.c.bf16 %v749, %v748
    %v762 = vpack.c.bf16 %v753, %v752
    %v763 = vpack.c.bf16 %v731, %v730
    %v764 = vpack.c.bf16 %v735, %v734
    %v765 = vpack.c.bf16 %v739, %v738
    %v766 = vpack.c.bf16 %v743, %v742
    %v767 = vpack.c.bf16 %v747, %v746
    %v768 = vpack.c.bf16 %v751, %v750
    %v769 = vpack.c.bf16 %v755, %v754
    %v770 = vld [vmem:[#allocation7] sm:$0xf]
    %v771 = vld [vmem:[#allocation7 + $0x4] sm:$0xf]
    %v772 = vld [vmem:[#allocation7 + $0x8] sm:$0xf]
    %v773 = vld [vmem:[#allocation7 + $0xc] sm:$0xf]
    %v774 = vld [vmem:[#allocation7 + $0x10] sm:$0xf]
    %v775 = vld [vmem:[#allocation7 + $0x14] sm:$0xf]
    %v776 = vld [vmem:[#allocation7 + $0x18] sm:$0xf]
    %v777 = vld [vmem:[#allocation7 + $0x1c] sm:$0xf]
    %v778 = vld [vmem:[#allocation7 + $0x20] sm:$0xf]
    %v779 = vld [vmem:[#allocation7 + $0x24] sm:$0xf]
    %v780 = vld [vmem:[#allocation7 + $0x28] sm:$0xf]
    %v781 = vld [vmem:[#allocation7 + $0x2c] sm:$0xf]
    %v782 = vld [vmem:[#allocation7 + $0x30] sm:$0xf]
    %v783 = vld [vmem:[#allocation7 + $0x34] sm:$0xf]
    %v784 = vld [vmem:[#allocation7 + $0x38] sm:$0xf]
    %v785 = vld [vmem:[#allocation7 + $0x3c] sm:$0xf]
    %v786 = vld [vmem:[#allocation7 + $0x40] sm:$0xf]
    %v787 = vld [vmem:[#allocation7 + $0x44] sm:$0xf]
    %v788 = vld [vmem:[#allocation7 + $0x48] sm:$0xf]
    %v789 = vld [vmem:[#allocation7 + $0x4c] sm:$0xf]
    %v790 = vld [vmem:[#allocation7 + $0x50] sm:$0xf]
    %v791 = vld [vmem:[#allocation7 + $0x54] sm:$0xf]
    %v792 = vld [vmem:[#allocation7 + $0x58] sm:$0xf]
    %v793 = vld [vmem:[#allocation7 + $0x5c] sm:$0xf]
    %v794 = vld [vmem:[#allocation7 + $0x60] sm:$0xf]
    %v795 = vld [vmem:[#allocation7 + $0x64] sm:$0xf]
    %v796 = vld [vmem:[#allocation7 + $0x68] sm:$0xf]
    %v797 = vld [vmem:[#allocation7 + $0x6c] sm:$0xf]
    %v798 = vld [vmem:[#allocation7 + $0x70] sm:$0xf]
    %v799 = vld [vmem:[#allocation7 + $0x74] sm:$0xf]
    %v800 = vld [vmem:[#allocation7 + $0x78] sm:$0xf]
    %v801 = vld [vmem:[#allocation7 + $0x7c] sm:$0xf]
    %v802 = vld [vmem:[#allocation7 + $0x80] sm:$0xf]
    %v803 = vld [vmem:[#allocation7 + $0x84] sm:$0xf]
    %v804 = vld [vmem:[#allocation7 + $0x88] sm:$0xf]
    %v805 = vld [vmem:[#allocation7 + $0x8c] sm:$0xf]
    %v806 = vld [vmem:[#allocation7 + $0x90] sm:$0xf]
    %v807 = vld [vmem:[#allocation7 + $0x94] sm:$0xf]
    %v808 = vld [vmem:[#allocation7 + $0x98] sm:$0xf]
    %v809 = vld [vmem:[#allocation7 + $0x9c] sm:$0xf]
    %v810 = vld [vmem:[#allocation7 + $0xa0] sm:$0xf]
    %v811 = vld [vmem:[#allocation7 + $0xa4] sm:$0xf]
    %v812 = vld [vmem:[#allocation7 + $0xa8] sm:$0xf]
    %v813 = vld [vmem:[#allocation7 + $0xac] sm:$0xf]
    %v814 = vld [vmem:[#allocation7 + $0xb0] sm:$0xf]
    %v815 = vld [vmem:[#allocation7 + $0xb4] sm:$0xf]
    %v816 = vld [vmem:[#allocation7 + $0xb8] sm:$0xf]
    %v817 = vld [vmem:[#allocation7 + $0xbc] sm:$0xf]
    %v818 = vld [vmem:[#allocation7 + $0xc0] sm:$0xf]
    %v819 = vld [vmem:[#allocation7 + $0xc4] sm:$0xf]
    %v820 = vld [vmem:[#allocation7 + $0xc8] sm:$0xf]
    %v821 = vld [vmem:[#allocation7 + $0xcc] sm:$0xf]
    %v822 = vld [vmem:[#allocation7 + $0xd0] sm:$0xf]
    %v823 = vld [vmem:[#allocation7 + $0xd4] sm:$0xf]
    %v824 = vld [vmem:[#allocation7 + $0xd8] sm:$0xf]
    %v825 = vld [vmem:[#allocation7 + $0xdc] sm:$0xf]
    %v826 = vld [vmem:[#allocation7 + $0xe0] sm:$0xf]
    %v827 = vld [vmem:[#allocation7 + $0xe4] sm:$0xf]
    %v828 = vld [vmem:[#allocation7 + $0xe8] sm:$0xf]
    %v829 = vld [vmem:[#allocation7 + $0xec] sm:$0xf]
    %v830 = vld [vmem:[#allocation7 + $0xf0] sm:$0xf]
    %v831 = vld [vmem:[#allocation7 + $0xf4] sm:$0xf]
    %v832 = vld [vmem:[#allocation7 + $0xf8] sm:$0xf]
    %v833 = vld [vmem:[#allocation7 + $0xfc] sm:$0xf]
    %v834 = vld [vmem:[#allocation7 + $0x100] sm:$0xf]
    %v835 = vld [vmem:[#allocation7 + $0x104] sm:$0xf]
    %v836 = vld [vmem:[#allocation7 + $0x108] sm:$0xf]
    %v837 = vld [vmem:[#allocation7 + $0x10c] sm:$0xf]
    %v838 = vld [vmem:[#allocation7 + $0x110] sm:$0xf]
    %v839 = vld [vmem:[#allocation7 + $0x114] sm:$0xf]
    %v840 = vld [vmem:[#allocation7 + $0x118] sm:$0xf]
    %v841 = vld [vmem:[#allocation7 + $0x11c] sm:$0xf]
    %v842 = vld [vmem:[#allocation7 + $0x120] sm:$0xf]
    %v843 = vld [vmem:[#allocation7 + $0x124] sm:$0xf]
    %v844 = vld [vmem:[#allocation7 + $0x128] sm:$0xf]
    %v845 = vld [vmem:[#allocation7 + $0x12c] sm:$0xf]
    %v846 = vld [vmem:[#allocation7 + $0x130] sm:$0xf]
    %v847 = vld [vmem:[#allocation7 + $0x134] sm:$0xf]
    %v848 = vld [vmem:[#allocation7 + $0x138] sm:$0xf]
    %v849 = vld [vmem:[#allocation7 + $0x13c] sm:$0xf]
    %v850 = vld [vmem:[#allocation7 + $0x140] sm:$0xf]
    %v851 = vld [vmem:[#allocation7 + $0x144] sm:$0xf]
    %v852 = vld [vmem:[#allocation7 + $0x148] sm:$0xf]
    %v853 = vld [vmem:[#allocation7 + $0x14c] sm:$0xf]
    %v854 = vld [vmem:[#allocation7 + $0x150] sm:$0xf]
    %v855 = vld [vmem:[#allocation7 + $0x154] sm:$0xf]
    %v856 = vld [vmem:[#allocation7 + $0x158] sm:$0xf]
    %v857 = vld [vmem:[#allocation7 + $0x15c] sm:$0xf]
    %v858 = vld [vmem:[#allocation7 + $0x160] sm:$0xf]
    %v859 = vld [vmem:[#allocation7 + $0x164] sm:$0xf]
    %v860 = vld [vmem:[#allocation7 + $0x168] sm:$0xf]
    %v861 = vld [vmem:[#allocation7 + $0x16c] sm:$0xf]
    %v862 = vld [vmem:[#allocation7 + $0x170] sm:$0xf]
    %v863 = vld [vmem:[#allocation7 + $0x174] sm:$0xf]
    %v864 = vld [vmem:[#allocation7 + $0x178] sm:$0xf]
    %v865 = vld [vmem:[#allocation7 + $0x17c] sm:$0xf]
    %v866 = vld [vmem:[#allocation7 + $0x180] sm:$0xf]
    %v867 = vld [vmem:[#allocation7 + $0x184] sm:$0xf]
    %v868 = vld [vmem:[#allocation7 + $0x188] sm:$0xf]
    %v869 = vld [vmem:[#allocation7 + $0x18c] sm:$0xf]
    %v870 = vld [vmem:[#allocation7 + $0x190] sm:$0xf]
    %v871 = vld [vmem:[#allocation7 + $0x194] sm:$0xf]
    %v872 = vld [vmem:[#allocation7 + $0x198] sm:$0xf]
    %v873 = vld [vmem:[#allocation7 + $0x19c] sm:$0xf]
    %v874 = vld [vmem:[#allocation7 + $0x1a0] sm:$0xf]
    %v875 = vld [vmem:[#allocation7 + $0x1a4] sm:$0xf]
    %v876 = vld [vmem:[#allocation7 + $0x1a8] sm:$0xf]
    %v877 = vld [vmem:[#allocation7 + $0x1ac] sm:$0xf]
    %v878 = vld [vmem:[#allocation7 + $0x1b0] sm:$0xf]
    %v879 = vld [vmem:[#allocation7 + $0x1b4] sm:$0xf]
    %v880 = vld [vmem:[#allocation7 + $0x1b8] sm:$0xf]
    %v881 = vld [vmem:[#allocation7 + $0x1bc] sm:$0xf]
    %v994 = vunpack.c.l.b16 %v770
    %v995 = vunpack.c.l.b16 %v771
    %v996 = vunpack.c.l.b16 %v772
    %v997 = vunpack.c.l.b16 %v773
    %v998 = vunpack.c.l.b16 %v774
    %v999 = vunpack.c.l.b16 %v775
    %v1000 = vunpack.c.l.b16 %v776
    %v1001 = vunpack.c.l.b16 %v777
    %v1002 = vunpack.c.l.b16 %v778
    %v1003 = vunpack.c.l.b16 %v779
    %v1004 = vunpack.c.l.b16 %v780
    %v1005 = vunpack.c.l.b16 %v781
    %v1006 = vunpack.c.l.b16 %v782
    %v1007 = vunpack.c.l.b16 %v783
    %v1008 = vunpack.c.l.b16 %v784
    %v1009 = vunpack.c.l.b16 %v785
    %v1010 = vunpack.c.l.b16 %v786
    %v1011 = vunpack.c.l.b16 %v787
    %v1012 = vunpack.c.l.b16 %v788
    %v1013 = vunpack.c.l.b16 %v789
    %v1014 = vunpack.c.l.b16 %v790
    %v1015 = vunpack.c.l.b16 %v791
    %v1016 = vunpack.c.l.b16 %v792
    %v1017 = vunpack.c.l.b16 %v793
    %v1018 = vunpack.c.l.b16 %v794
    %v1019 = vunpack.c.l.b16 %v795
    %v1020 = vunpack.c.l.b16 %v796
    %v1021 = vunpack.c.l.b16 %v797
    %v1022 = vunpack.c.l.b16 %v798
    %v1023 = vunpack.c.l.b16 %v799
    %v1024 = vunpack.c.l.b16 %v800
    %v1025 = vunpack.c.l.b16 %v801
    %v1026 = vunpack.c.l.b16 %v802
    %v1027 = vunpack.c.l.b16 %v803
    %v1028 = vunpack.c.l.b16 %v804
    %v1029 = vunpack.c.l.b16 %v805
    %v1030 = vunpack.c.l.b16 %v806
    %v1031 = vunpack.c.l.b16 %v807
    %v1032 = vunpack.c.l.b16 %v808
    %v1033 = vunpack.c.l.b16 %v809
    %v1034 = vunpack.c.l.b16 %v810
    %v1035 = vunpack.c.l.b16 %v811
    %v1036 = vunpack.c.l.b16 %v812
    %v1037 = vunpack.c.l.b16 %v813
    %v1038 = vunpack.c.l.b16 %v814
    %v1039 = vunpack.c.l.b16 %v815
    %v1040 = vunpack.c.l.b16 %v816
    %v1041 = vunpack.c.l.b16 %v817
    %v1042 = vunpack.c.l.b16 %v818
    %v1043 = vunpack.c.l.b16 %v819
    %v1044 = vunpack.c.l.b16 %v820
    %v1045 = vunpack.c.l.b16 %v821
    %v1046 = vunpack.c.l.b16 %v822
    %v1047 = vunpack.c.l.b16 %v823
    %v1048 = vunpack.c.l.b16 %v824
    %v1049 = vunpack.c.l.b16 %v825
    %v1050 = vunpack.c.l.b16 %v826
    %v1051 = vunpack.c.l.b16 %v827
    %v1052 = vunpack.c.l.b16 %v828
    %v1053 = vunpack.c.l.b16 %v829
    %v1054 = vunpack.c.l.b16 %v830
    %v1055 = vunpack.c.l.b16 %v831
    %v1056 = vunpack.c.l.b16 %v832
    %v1057 = vunpack.c.l.b16 %v833
    %v1058 = vunpack.c.l.b16 %v834
    %v1059 = vunpack.c.l.b16 %v835
    %v1060 = vunpack.c.l.b16 %v836
    %v1061 = vunpack.c.l.b16 %v837
    %v1062 = vunpack.c.l.b16 %v838
    %v1063 = vunpack.c.l.b16 %v839
    %v1064 = vunpack.c.l.b16 %v840
    %v1065 = vunpack.c.l.b16 %v841
    %v1066 = vunpack.c.l.b16 %v842
    %v1067 = vunpack.c.l.b16 %v843
    %v1068 = vunpack.c.l.b16 %v844
    %v1069 = vunpack.c.l.b16 %v845
    %v1070 = vunpack.c.l.b16 %v846
    %v1071 = vunpack.c.l.b16 %v847
    %v1072 = vunpack.c.l.b16 %v848
    %v1073 = vunpack.c.l.b16 %v849
    %v1074 = vunpack.c.l.b16 %v850
    %v1075 = vunpack.c.l.b16 %v851
    %v1076 = vunpack.c.l.b16 %v852
    %v1077 = vunpack.c.l.b16 %v853
    %v1078 = vunpack.c.l.b16 %v854
    %v1079 = vunpack.c.l.b16 %v855
    %v1080 = vunpack.c.l.b16 %v856
    %v1081 = vunpack.c.l.b16 %v857
    %v1082 = vunpack.c.l.b16 %v858
    %v1083 = vunpack.c.l.b16 %v859
    %v1084 = vunpack.c.l.b16 %v860
    %v1085 = vunpack.c.l.b16 %v861
    %v1086 = vunpack.c.l.b16 %v862
    %v1087 = vunpack.c.l.b16 %v863
    %v1088 = vunpack.c.l.b16 %v864
    %v1089 = vunpack.c.l.b16 %v865
    %v1090 = vunpack.c.l.b16 %v866
    %v1091 = vunpack.c.l.b16 %v867
    %v1092 = vunpack.c.l.b16 %v868
    %v1093 = vunpack.c.l.b16 %v869
    %v1094 = vunpack.c.l.b16 %v870
    %v1095 = vunpack.c.l.b16 %v871
    %v1096 = vunpack.c.l.b16 %v872
    %v1097 = vunpack.c.l.b16 %v873
    %v1098 = vunpack.c.l.b16 %v874
    %v1099 = vunpack.c.l.b16 %v875
    %v1100 = vunpack.c.l.b16 %v876
    %v1101 = vunpack.c.l.b16 %v877
    %v1102 = vunpack.c.l.b16 %v878
    %v1103 = vunpack.c.l.b16 %v879
    %v1104 = vunpack.c.l.b16 %v880
    %v1105 = vunpack.c.l.b16 %v881
    %v1106 = vpack.c.b16 %v995, %v994
    %v1107 = vpack.c.b16 %v997, %v996
    %v1108 = vpack.c.b16 %v999, %v998
    %v1109 = vpack.c.b16 %v1001, %v1000
    %v1110 = vpack.c.b16 %v1003, %v1002
    %v1111 = vpack.c.b16 %v1005, %v1004
    %v1112 = vpack.c.b16 %v1007, %v1006
    %v1113 = vpack.c.b16 %v1009, %v1008
    %v1114 = vpack.c.b16 %v1011, %v1010
    %v1115 = vpack.c.b16 %v1013, %v1012
    %v1116 = vpack.c.b16 %v1015, %v1014
    %v1117 = vpack.c.b16 %v1017, %v1016
    %v1118 = vpack.c.b16 %v1019, %v1018
    %v1119 = vpack.c.b16 %v1021, %v1020
    %v1120 = vpack.c.b16 %v1023, %v1022
    %v1121 = vpack.c.b16 %v1025, %v1024
    %v1122 = vpack.c.b16 %v1027, %v1026
    %v1123 = vpack.c.b16 %v1029, %v1028
    %v1124 = vpack.c.b16 %v1031, %v1030
    %v1125 = vpack.c.b16 %v1033, %v1032
    %v1126 = vpack.c.b16 %v1035, %v1034
    %v1127 = vpack.c.b16 %v1037, %v1036
    %v1128 = vpack.c.b16 %v1039, %v1038
    %v1129 = vpack.c.b16 %v1041, %v1040
    %v1130 = vpack.c.b16 %v1043, %v1042
    %v1131 = vpack.c.b16 %v1045, %v1044
    %v1132 = vpack.c.b16 %v1047, %v1046
    %v1133 = vpack.c.b16 %v1049, %v1048
    %v1134 = vpack.c.b16 %v1051, %v1050
    %v1135 = vpack.c.b16 %v1053, %v1052
    %v1136 = vpack.c.b16 %v1055, %v1054
    %v1137 = vpack.c.b16 %v1057, %v1056
    %v1138 = vpack.c.b16 %v1059, %v1058
    %v1139 = vpack.c.b16 %v1061, %v1060
    %v1140 = vpack.c.b16 %v1063, %v1062
    %v1141 = vpack.c.b16 %v1065, %v1064
    %v1142 = vpack.c.b16 %v1067, %v1066
    %v1143 = vpack.c.b16 %v1069, %v1068
    %v1144 = vpack.c.b16 %v1071, %v1070
    %v1145 = vpack.c.b16 %v1073, %v1072
    %v1146 = vpack.c.b16 %v1075, %v1074
    %v1147 = vpack.c.b16 %v1077, %v1076
    %v1148 = vpack.c.b16 %v1079, %v1078
    %v1149 = vpack.c.b16 %v1081, %v1080
    %v1150 = vpack.c.b16 %v1083, %v1082
    %v1151 = vpack.c.b16 %v1085, %v1084
    %v1152 = vpack.c.b16 %v1087, %v1086
    %v1153 = vpack.c.b16 %v1089, %v1088
    %v1154 = vpack.c.b16 %v1091, %v1090
    %v1155 = vpack.c.b16 %v1093, %v1092
    %v1156 = vpack.c.b16 %v1095, %v1094
    %v1157 = vpack.c.b16 %v1097, %v1096
    %v1158 = vpack.c.b16 %v1099, %v1098
    %v1159 = vpack.c.b16 %v1101, %v1100
    %v1160 = vpack.c.b16 %v1103, %v1102
    %v1161 = vpack.c.b16 %v1105, %v1104
    %1218 = vmatpush.bf16.msra.mxu0 %v1113
    %1219 = vmatpush.bf16.msra.mxu0 %v1112
    %1220 = vmatpush.bf16.msra.mxu0 %v1111
    %1221 = vmatpush.bf16.msra.mxu0 %v1110
    %1222 = vmatpush.bf16.msra.mxu0 %v1109
    %1223 = vmatpush.bf16.msra.mxu0 %v1108
    %1224 = vmatpush.bf16.msra.mxu0 %v1107
    %1225 = vmatpush.bf16.msra.mxu0 %v1106
    %1226 = vmatmul.bf16.gmra.mxu0 %v756
    %v1227 = vpop.f32.mrf.mxu0
    %v1228 = vadd.f32 0.0, %v1227
    %v1229 = vpop.f32.mrf.mxu0
    %v1230 = vadd.f32 0.0, %v1229
    %1231 = vmatmul.bf16.gmra.mxu0 %v763
    %v1232 = vpop.f32.mrf.mxu0
    %v1233 = vadd.f32 0.0, %v1232
    %v1234 = vpop.f32.mrf.mxu0
    %v1235 = vadd.f32 0.0, %v1234
    %1236 = vdwg.mxu0
    %1237 = vmatpush.bf16.msra.mxu0 %v1121
    %1238 = vmatpush.bf16.msra.mxu0 %v1120
    %1239 = vmatpush.bf16.msra.mxu0 %v1119
    %1240 = vmatpush.bf16.msra.mxu0 %v1118
    %1241 = vmatpush.bf16.msra.mxu0 %v1117
    %1242 = vmatpush.bf16.msra.mxu0 %v1116
    %1243 = vmatpush.bf16.msra.mxu0 %v1115
    %1244 = vmatpush.bf16.msra.mxu0 %v1114
    %1245 = vmatmul.bf16.gmra.mxu0 %v757
    %v1246 = vpop.f32.mrf.mxu0
    %v1247 = vadd.f32 %v1228, %v1246
    %v1248 = vpop.f32.mrf.mxu0
    %v1249 = vadd.f32 %v1230, %v1248
    %1250 = vmatmul.bf16.gmra.mxu0 %v764
    %v1251 = vpop.f32.mrf.mxu0
    %v1252 = vadd.f32 %v1233, %v1251
    %v1253 = vpop.f32.mrf.mxu0
    %v1254 = vadd.f32 %v1235, %v1253
    %1255 = vdwg.mxu0
    %1256 = vmatpush.bf16.msra.mxu0 %v1129
    %1257 = vmatpush.bf16.msra.mxu0 %v1128
    %1258 = vmatpush.bf16.msra.mxu0 %v1127
    %1259 = vmatpush.bf16.msra.mxu0 %v1126
    %1260 = vmatpush.bf16.msra.mxu0 %v1125
    %1261 = vmatpush.bf16.msra.mxu0 %v1124
    %1262 = vmatpush.bf16.msra.mxu0 %v1123
    %1263 = vmatpush.bf16.msra.mxu0 %v1122
    %1264 = vmatmul.bf16.gmra.mxu0 %v758
    %v1265 = vpop.f32.mrf.mxu0
    %v1266 = vadd.f32 %v1247, %v1265
    %v1267 = vpop.f32.mrf.mxu0
    %v1268 = vadd.f32 %v1249, %v1267
    %1269 = vmatmul.bf16.gmra.mxu0 %v765
    %v1270 = vpop.f32.mrf.mxu0
    %v1271 = vadd.f32 %v1252, %v1270
    %v1272 = vpop.f32.mrf.mxu0
    %v1273 = vadd.f32 %v1254, %v1272
    %1274 = vdwg.mxu0
    %1275 = vmatpush.bf16.msra.mxu0 %v1137
    %1276 = vmatpush.bf16.msra.mxu0 %v1136
    %1277 = vmatpush.bf16.msra.mxu0 %v1135
    %1278 = vmatpush.bf16.msra.mxu0 %v1134
    %1279 = vmatpush.bf16.msra.mxu0 %v1133
    %1280 = vmatpush.bf16.msra.mxu0 %v1132
    %1281 = vmatpush.bf16.msra.mxu0 %v1131
    %1282 = vmatpush.bf16.msra.mxu0 %v1130
    %1283 = vmatmul.bf16.gmra.mxu0 %v759
    %v1284 = vpop.f32.mrf.mxu0
    %v1285 = vadd.f32 %v1266, %v1284
    %v1286 = vpop.f32.mrf.mxu0
    %v1287 = vadd.f32 %v1268, %v1286
    %1288 = vmatmul.bf16.gmra.mxu0 %v766
    %v1289 = vpop.f32.mrf.mxu0
    %v1290 = vadd.f32 %v1271, %v1289
    %v1291 = vpop.f32.mrf.mxu0
    %v1292 = vadd.f32 %v1273, %v1291
    %1293 = vdwg.mxu0
    %1294 = vmatpush.bf16.msra.mxu0 %v1145
    %1295 = vmatpush.bf16.msra.mxu0 %v1144
    %1296 = vmatpush.bf16.msra.mxu0 %v1143
    %1297 = vmatpush.bf16.msra.mxu0 %v1142
    %1298 = vmatpush.bf16.msra.mxu0 %v1141
    %1299 = vmatpush.bf16.msra.mxu0 %v1140
    %1300 = vmatpush.bf16.msra.mxu0 %v1139
    %1301 = vmatpush.bf16.msra.mxu0 %v1138
    %1302 = vmatmul.bf16.gmra.mxu0 %v760
    %v1303 = vpop.f32.mrf.mxu0
    %v1304 = vadd.f32 %v1285, %v1303
    %v1305 = vpop.f32.mrf.mxu0
    %v1306 = vadd.f32 %v1287, %v1305
    %1307 = vmatmul.bf16.gmra.mxu0 %v767
    %v1308 = vpop.f32.mrf.mxu0
    %v1309 = vadd.f32 %v1290, %v1308
    %v1310 = vpop.f32.mrf.mxu0
    %v1311 = vadd.f32 %v1292, %v1310
    %1312 = vdwg.mxu0
    %1313 = vmatpush.bf16.msra.mxu0 %v1153
    %1314 = vmatpush.bf16.msra.mxu0 %v1152
    %1315 = vmatpush.bf16.msra.mxu0 %v1151
    %1316 = vmatpush.bf16.msra.mxu0 %v1150
    %1317 = vmatpush.bf16.msra.mxu0 %v1149
    %1318 = vmatpush.bf16.msra.mxu0 %v1148
    %1319 = vmatpush.bf16.msra.mxu0 %v1147
    %1320 = vmatpush.bf16.msra.mxu0 %v1146
    %1321 = vmatmul.bf16.gmra.mxu0 %v761
    %v1322 = vpop.f32.mrf.mxu0
    %v1323 = vadd.f32 %v1304, %v1322
    %v1324 = vpop.f32.mrf.mxu0
    %v1325 = vadd.f32 %v1306, %v1324
    %1326 = vmatmul.bf16.gmra.mxu0 %v768
    %v1327 = vpop.f32.mrf.mxu0
    %v1328 = vadd.f32 %v1309, %v1327
    %v1329 = vpop.f32.mrf.mxu0
    %v1330 = vadd.f32 %v1311, %v1329
    %1331 = vdwg.mxu0
    %1332 = vmatpush.bf16.msra.mxu0 %v1161
    %1333 = vmatpush.bf16.msra.mxu0 %v1160
    %1334 = vmatpush.bf16.msra.mxu0 %v1159
    %1335 = vmatpush.bf16.msra.mxu0 %v1158
    %1336 = vmatpush.bf16.msra.mxu0 %v1157
    %1337 = vmatpush.bf16.msra.mxu0 %v1156
    %1338 = vmatpush.bf16.msra.mxu0 %v1155
    %1339 = vmatpush.bf16.msra.mxu0 %v1154
    %1340 = vmatmul.bf16.gmra.mxu0 %v762
    %v1341 = vpop.f32.mrf.mxu0
    %v1342 = vadd.f32 %v1323, %v1341
    %v1343 = vpop.f32.mrf.mxu0
    %v1344 = vadd.f32 %v1325, %v1343
    %1345 = vmatmul.bf16.gmra.mxu0 %v769
    %v1346 = vpop.f32.mrf.mxu0
    %v1347 = vadd.f32 %v1328, %v1346
    %v1348 = vpop.f32.mrf.mxu0
    %v1349 = vadd.f32 %v1330, %v1348
    %1350 = vdwg.mxu0
    %v1351 = vld [vmem:[%s5] sm:$0x1]
    %v1353 = vperm.slane %v1351, 0
    %v1355 = vmul.f32 %v1342, %v1353
    %v1356 = vmul.f32 %v1344, %v1353
    %v1357 = vmul.f32 %v1347, %v1353
    %v1358 = vmul.f32 %v1349, %v1353
    %v1359 = vld [vmem:[%s6] sm:$0x1]
    %v1361 = vperm.slane %v1359, 0
    %v1363 = vadd.f32 %v1355, %v1361
    %v1364 = vadd.f32 %v1356, %v1361
    %v1365 = vadd.f32 %v1357, %v1361
    %v1366 = vadd.f32 %v1358, %v1361
    %v1367 = vadd.f32 %v1363, %v1364
    %v1368 = vrot.slane %v1367, 4
    %v1369 = vadd.f32 %v1367, %v1368
    %v1370 = vrot.slane %v1369, 2
    %v1371 = vadd.f32 %v1369, %v1370
    %v1372 = vrot.slane %v1371, 1
    %v1373 = vadd.f32 %v1371, %v1372
    %v1374 = vadd.f32 %v1365, %v1366
    %v1375 = vrot.slane %v1374, 4
    %v1376 = vadd.f32 %v1374, %v1375
    %v1377 = vrot.slane %v1376, 2
    %v1378 = vadd.f32 %v1376, %v1377
    %v1379 = vrot.slane %v1378, 1
    %v1380 = vadd.f32 %v1378, %v1379
    %v1381 = vrcp.pop 16.0
    %v1382 = vmul.f32 16.0, %v1381
    %v1383 = vsub.f32 1.0, %v1382
    %v1384 = vmul.f32 %v1381, %v1383
    %v1385 = vadd.f32 %v1381, %v1384
    %vm1386 = vweird.f32 %v1381
    %v1387 = vsel %vm1386, %v1381, %v1385
    %v1388 = vmul.f32 %v1373, %v1387
    %v1389 = vmul.f32 %v1380, %v1387
    %v1390 = vld [vmem:[%s7] sm:$0xff]
    %v1391 = vld [vmem:[%s7 + $0x8] sm:$0xff]
    %v1392 = vld [vmem:[%s7 + $0x10] sm:$0xff]
    %v1393 = vld [vmem:[%s7 + $0x18] sm:$0xff]
    %v1394 = vld [vmem:[%s7 + $0x20] sm:$0xff]
    %v1395 = vld [vmem:[%s7 + $0x28] sm:$0xff]
    %v1396 = vld [vmem:[%s7 + $0x30] sm:$0xff]
    %v1397 = vld [vmem:[%s7 + $0x38] sm:$0xff]
    %v1398 = vld [vmem:[%s7 + $0x40] sm:$0xff]
    %v1399 = vld [vmem:[%s7 + $0x48] sm:$0xff]
    %v1400 = vld [vmem:[%s7 + $0x50] sm:$0xff]
    %v1401 = vld [vmem:[%s7 + $0x58] sm:$0xff]
    %v1402 = vld [vmem:[%s7 + $0x60] sm:$0xff]
    %v1403 = vld [vmem:[%s7 + $0x68] sm:$0xff]
    %v1404 = vld [vmem:[%s7 + $0x70] sm:$0xff]
    %v1405 = vld [vmem:[%s7 + $0x78] sm:$0xff]
    %vm1408 = vcmask 1041409
    %v1409 = vsel %vm1408, %v1389, %v1388
    %1411 = vmatpush.msra.mxu0 %v1405
    %1412 = vmatpush.msra.mxu0 %v1404
    %1413 = vmatpush.msra.mxu0 %v1403
    %1414 = vmatpush.msra.mxu0 %v1402
    %1415 = vmatpush.msra.mxu0 %v1401
    %1416 = vmatpush.msra.mxu0 %v1400
    %1417 = vmatpush.msra.mxu0 %v1399
    %1418 = vmatpush.msra.mxu0 %v1398
    %1419 = vmatpush.msra.mxu0 %v1397
    %1420 = vmatpush.msra.mxu0 %v1396
    %1421 = vmatpush.msra.mxu0 %v1395
    %1422 = vmatpush.msra.mxu0 %v1394
    %1423 = vmatpush.msra.mxu0 %v1393
    %1424 = vmatpush.msra.mxu0 %v1392
    %1425 = vmatpush.msra.mxu0 %v1391
    %1426 = vmatpush.msra.mxu0 %v1390
    %1427 = vmatmul.f32.gmra.mxu0 %v1409
    %v1428 = vpop.f32.mrf.mxu0
    %v1429 = vadd.f32 0.0, %v1428
    %1430 = vdwg.mxu0
    %v1431 = vmax.f32 %v1429, 0.0
    %v1432 = vld [vmem:[%s8] sm:$0x3]
    %vm1433 = vcmask 15360
    %v1435 = vsel %vm1433, %v1431, 0
    %vm1437 = vcmask 1041408
    %v1439 = vsel %vm1437, %v1432, 0
    %1441 = vmatpush.msra.mxu0 0.0
    %1442 = vmatpush.msra.mxu0 0.0
    %1443 = vmatpush.msra.mxu0 0.0
    %1444 = vmatpush.msra.mxu0 0.0
    %1445 = vmatpush.msra.mxu0 0.0
    %1446 = vmatpush.msra.mxu0 0.0
    %1447 = vmatpush.msra.mxu0 0.0
    %1448 = vmatpush.msra.mxu0 0.0
    %1449 = vmatpush.msra.mxu0 0.0
    %1450 = vmatpush.msra.mxu0 0.0
    %1451 = vmatpush.msra.mxu0 0.0
    %1452 = vmatpush.msra.mxu0 0.0
    %1453 = vmatpush.msra.mxu0 0.0
    %1454 = vmatpush.msra.mxu0 0.0
    %1455 = vmatpush.msra.mxu0 0.0
    %1456 = vmatpush.msra.mxu0 %v1439
    %1457 = vmatmul.f32.gmra.mxu0 %v1435
    %v1458 = vpop.f32.mrf.mxu0
    %v1459 = vadd.f32 0.0, %v1458
    %1460 = vdwg.mxu0
    %v1461 = vxor.u32 %v1459, 2147483648
    %v1462 = vmul.f32 %v1461, 1.442695
    %v1463 = vpow.pop %v1462
    %v1464 = vadd.f32 %v1463, 1.0
    %v1465 = vrcp.pop %v1464
    %v1466 = vmul.f32 %v1464, %v1465
    %v1467 = vsub.f32 1.0, %v1466
    %v1468 = vmul.f32 %v1465, %v1467
    %v1469 = vadd.f32 %v1465, %v1468
    %vm1470 = vweird.f32 %v1464
    %vm1471 = vweird.f32 %v1465
    %vm1472 = vmor %vm1470, %vm1471
    %v1473 = vsel %vm1472, %v1465, %v1469
    %v1474 = vand.u32 2147483647, %v1464
    %vm1475 = vcmp.eq.f32.partialorder %v1474, 8.507059e+37
    %v1476 = vand.u32 %v1464, 2147483648
    %v1477 = vor.u32 1.1754944e-38, %v1476
    %v1478 = vsel %vm1475, %v1477, %v1473
    %v1479 = vmul.f32 1.0, %v1478
    %v1481 = vrot.slane %v1479, 1
    %v1482 = vperm.slane %v1479, 0
    %v1483 = vperm.slane %v1481, 0
    %v1486 = vmul.f32 %v1363, %v1482
    %v1487 = vmul.f32 %v1364, %v1482
    %v1488 = vmul.f32 %v1365, %v1483
    %v1489 = vmul.f32 %v1366, %v1483
    %v1490 = vadd.f32 %v1486, %v73
    %v1491 = vadd.f32 %v1487, %v74
    %v1492 = vadd.f32 %v1488, %v75
    %v1493 = vadd.f32 %v1489, %v76
    %v1494 = vmax.f32 %v1490, 0.0
    %v1495 = vmax.f32 %v1491, 0.0
    %v1496 = vmax.f32 %v1492, 0.0
    %v1497 = vmax.f32 %v1493, 0.0
    %1498 = vst [vmem:[#allocation9] sm:$0xff] %v1494
    %1499 = vst [vmem:[#allocation9 + $0x8] sm:$0xff] %v1495
    %1500 = vst [vmem:[#allocation9 + $0x10] sm:$0xff] %v1496
    %1501 = vst [vmem:[#allocation9 + $0x18] sm:$0xff] %v1497
    // Predicated region
    $region46: #{tpu_custom_call.1} parent=1 // pred_check
      _
    $region47: #{tpu_custom_call.1} parent=1 // pred_check_branch
      %1503 = sbr.rel (0) target = $region49
    $region48: #{tpu_custom_call.1} parent=1 // pred_region
      %1505 = vsyncadd [#allocation6], 0
      %s1506 = sshll.u32 [#allocation9], 4
      %s1507 = int_to_ptr.vmem [resolvable:$true] %s1506
      %s1508 = sshll.u32 %s9, 4
      %s1509 = int_to_ptr.hbm [resolvable:$true] %s1508
      %1514 = dma.vmem_to_hbm [thread:$0]  %s1507, 512, %s1509, [#allocation6], 128, 128, 8
    $region49: #{tpu_custom_call.1} parent=1 // pred_fallthru
      _
    // Predicated region
    $region50: #{tpu_custom_call.1} parent=1 // pred_check
      _
    $region51: #{tpu_custom_call.1} parent=1 // pred_check_branch
      %1516 = sbr.rel (0) target = $region53
    $region52: #{tpu_custom_call.1} parent=1 // pred_region
      %1518 = dma.done [#allocation6], 512
    $region53: #{tpu_custom_call.1} parent=1 // pred_fallthru
      _
    %1519 = vsyncpa [#allocation5], 1
    %1520 = vsyncpa [#allocation8], 1
    %1521 = vsyncpa [#allocation6], 1

</llo_original>
